<compile_context>
chip_gen: v7x
topology: tpu7x:2x2x1
jax: 0.10.0
libtpu: 0.0.40
codegen_flags: <defaults>
</compile_context>

<pallas_src>
import math

import jax
import jax.numpy as jnp
from jax.experimental import pallas as pl
from jax.experimental.pallas import tpu as pltpu


def _round_up(n, m):
    return ((n + m - 1) // m) * m


# ------------------------------ kernel body ---------------------------------

def _mlp_kernel(x_ref,
                w1_ref, b1_ref, w2_ref, b2_ref, w3_ref, b3_ref,
                w4_ref, b4_ref, w5_ref, b5_ref,
                o_ref):
    """Fused forward pass for one batch tile (all weights resident in VMEM)."""

    def dense(h_bf16, w_ref, b_ref):
        # bf16 operands on the MXU, f32 accumulation, (1, dout) f32 bias
        # broadcast over the batch rows.
        return (jnp.dot(h_bf16, w_ref[...], preferred_element_type=jnp.float32)
                + b_ref[...])

    # f32 HBM read; cast to bf16 on the VPU inside the kernel.
    h = x_ref[...].astype(jnp.bfloat16)
    h = jax.nn.relu(dense(h, w1_ref, b1_ref)).astype(jnp.bfloat16)   # fc1
    h = jax.nn.relu(dense(h, w2_ref, b2_ref)).astype(jnp.bfloat16)   # fc2
    h = jax.nn.relu(dense(h, w3_ref, b3_ref)).astype(jnp.bfloat16)   # fc3
    h = jax.nn.relu(dense(h, w4_ref, b4_ref)).astype(jnp.bfloat16)   # fc4
    h = jax.nn.sigmoid(dense(h, w5_ref, b5_ref))                     # fc5 (f32)
    o_ref[...] = h.astype(o_ref.dtype)   # lane-dense (out_pad % 128 == 0) store


# --------------------------- hardware detection ------------------------------

def _tpu_kind():
    try:
        return jax.devices()[0].device_kind.lower()
    except Exception:
        return ""


def _is_v7x():
    kind = _tpu_kind()
    return ("tpu" in kind) and ("7" in kind)


def _vmem_capacity_bytes():
    try:
        cap = int(getattr(pltpu.get_tpu_info(), "vmem_capacity_bytes", 0) or 0)
        if cap > 0:
            return cap
    except Exception:
        pass
    if _is_v7x():
        return 64 << 20
    kind = _tpu_kind()
    if any(g in kind for g in ("v4", "v5", "v6")):
        return 128 << 20
    return 64 << 20   # conservative fallback


# -------------------------------- wrapper ------------------------------------

def mlp_mlc_md_forward(x, params, *, max_batch_tile=2048, slice_output=True,
                       out_dtype=jnp.bfloat16):
    """x: [B, input_size] f32.  params: dict name -> (w [in,out], b [out]) f32."""
    B, din = x.shape
    (w1, b1), (w2, b2), (w3, b3), (w4, b4), (w5, b5) = (
        params["fc1"], params["fc2"], params["fc3"], params["fc4"],
        params["fc5"])
    out_size = w5.shape[1]

    # ---- lane-dense output: zero-pad fc5 to a multiple of 128 lanes ---------
    out_pad = _round_up(out_size, 128)
    if out_pad != out_size:
        w5 = jnp.pad(w5, ((0, 0), (0, out_pad - out_size)))
        b5 = jnp.pad(b5, (0, out_pad - out_size))

    weights = [w.astype(jnp.bfloat16) for w in (w1, w2, w3, w4, w5)]
    biases = [b.astype(jnp.float32).reshape(1, -1) for b in (b1, b2, b3, b4, b5)]
    layer_dims = [w.shape[1] for w in weights]            # d1..d4, out_pad

    # ---- VMEM accounting (weights single-buffered, x/out double-buffered) ---
    resident_bytes = (sum(int(w.size) * 2 for w in weights)
                      + sum(int(b.size) * 4 for b in biases))
    per_row_bytes = (din * 4 * 2                          # f32 input, 2 buffers
                     + sum(d * (4 + 2) for d in layer_dims)  # f32+bf16 act slabs
                     + out_pad * 2 * 2)                   # bf16 output, 2 buffers

    vmem_cap = _vmem_capacity_bytes()
    budget = int(vmem_cap * 0.85)                         # DMA/scratch headroom

    # ---- batch tile: as large as the budget allows, multiple of 8 -----------
    avail = max(budget - resident_bytes, 8 * per_row_bytes)
    tile = max(8, (avail // per_row_bytes) // 8 * 8)
    tile = min(tile, int(max_batch_tile), _round_up(B, 8))
    # v7x only: ensure >=2 grid steps so dimension_semantics=("parallel",) can
    # shard across its 2 TensorCores.  On single-core v5e/v6e this would only
    # add per-step overhead, so keep the largest tile there.
    if _is_v7x() and B > 8 and _round_up(B, tile) // tile < 2:
        tile = _round_up(pl.cdiv(B, 2), 8)
    B_pad = _round_up(B, tile)
    grid = (B_pad // tile,)

    xb = x.astype(jnp.float32)
    if B_pad != B:
        # Explicit zero-pad of the boundary block (only when needed) so no
        # undefined boundary reads ever feed the matmuls.
        xb = jnp.pad(xb, ((0, B_pad - B), (0, 0)))

    # ---- block specs ---------------------------------------------------------
    def resident_spec(shape):
        # Constant index_map -> never re-DMA'd; single-buffer to halve VMEM.
        try:
            return pl.BlockSpec(shape, lambda i: (0, 0),
                                pipeline_mode=pl.Buffered(1))
        except (TypeError, ValueError):
            return pl.BlockSpec(shape, lambda i: (0, 0))

    in_specs = [pl.BlockSpec((tile, din), lambda i: (i, 0))]
    for w, b in zip(weights, biases):
        in_specs.append(resident_spec(w.shape))
        in_specs.append(resident_spec(b.shape))
    out_spec = pl.BlockSpec((tile, out_pad), lambda i: (i, 0))

    # ---- scoped VMEM limit (defaults are only 16/32 MiB) ---------------------
    vmem_needed = resident_bytes + tile * per_row_bytes
    vmem_limit = int(min(int(vmem_cap * 0.9),
                         max(vmem_needed + (4 << 20), 16 << 20)))

    # ---- advisory cost estimate ----------------------------------------------
    dims = [din] + layer_dims
    flops = 2 * B_pad * sum(a * b for a, b in zip(dims[:-1], dims[1:]))
    bytes_accessed = int(xb.size) * 4 + B_pad * out_pad * 2 + resident_bytes
    cost = pl.CostEstimate(flops=int(flops),
                           transcendentals=int(B_pad * out_pad),
                           bytes_accessed=int(bytes_accessed))

    # TODO(synk): for very large hidden sizes (resident weights > ~32 MiB on
    # v7x) add a K-reduction grid axis that streams fc2's weight with an f32
    # accumulator instead of keeping every layer fully resident.

    fn = pl.pallas_call(
        _mlp_kernel,
        grid=grid,
        in_specs=in_specs,
        out_specs=out_spec,
        out_shape=jax.ShapeDtypeStruct((B_pad, out_pad), out_dtype),
        compiler_params=pltpu.CompilerParams(
            dimension_semantics=("parallel",),
            vmem_limit_bytes=vmem_limit),
        cost_estimate=cost,
    )
    flat_args = [a for pair in zip(weights, biases) for a in pair]
    out = fn(xb, *flat_args)
    if slice_output:
        out = out[:B, :out_size]
    return out


# ------------------------- init + pure-JAX reference -------------------------

def xavier_uniform(key, fan_in, fan_out, dtype=jnp.float32):
    # Matches torch.nn.init.xavier_uniform_ for a Linear weight of shape
    # (fan_out, fan_in); generated directly as [fan_in, fan_out].
    bound = math.sqrt(6.0 / (fan_in + fan_out))
    return jax.random.uniform(key, (fan_in, fan_out), dtype=dtype,
                              minval=-bound, maxval=bound)


def init_params(key, input_size, hidden_size, output_size):
    dims = [
        ("fc1", input_size, hidden_size * 4),
        ("fc2", hidden_size * 4, hidden_size),
        ("fc3", hidden_size, hidden_size),
        ("fc4", hidden_size, hidden_size // 2),
        ("fc5", hidden_size // 2, output_size),
    ]
    params = {}
    keys = jax.random.split(key, len(dims))
    for k, (name, din, dout) in zip(keys, dims):
        w = xavier_uniform(k, din, dout)
        b = jnp.zeros((dout,), jnp.float32)  # constant_(bias, 0.0)
        params[name] = (w, b)
    return params


def reference_forward(x, params):
    """Pure-JAX reference with the same bf16-operand / f32-accumulate math."""
    h = x
    acts = [jax.nn.relu, jax.nn.relu, jax.nn.relu, jax.nn.relu, jax.nn.sigmoid]
    for name, act in zip(["fc1", "fc2", "fc3", "fc4", "fc5"], acts):
        w, b = params[name]
        h = jnp.dot(h.astype(jnp.bfloat16), w.astype(jnp.bfloat16),
                    preferred_element_type=jnp.float32) + b
        h = act(h)
    return h


if __name__ == "__main__":
    input_size, hidden_size, output_size = 16, 32, 8
    batch = 256

    key = jax.random.PRNGKey(0)
    kx, kp = jax.random.split(key)
    x = jax.random.normal(kx, (batch, input_size), dtype=jnp.float32)
    params = init_params(kp, input_size, hidden_size, output_size)

    out = jax.block_until_ready(mlp_mlc_md_forward(x, params))
    ref = reference_forward(x, params)
    assert out.shape == (batch, output_size)
    err = float(jnp.max(jnp.abs(out.astype(jnp.float32) - ref)))
    assert err < 5e-3, err  # bf16 output rounding is ~1e-3 max for sigmoid range

    # Odd batch (not a multiple of 8 or of the tile) -> pad + slice path.
    x2 = jax.random.normal(jax.random.PRNGKey(1), (37, input_size), jnp.float32)
    out2 = jax.block_until_ready(mlp_mlc_md_forward(x2, params))
    ref2 = reference_forward(x2, params)
    assert out2.shape == (37, output_size)
    err2 = float(jnp.max(jnp.abs(out2.astype(jnp.float32) - ref2)))
    assert err2 < 5e-3, err2

    print("KERNEL_OK")
</pallas_src>

<mosaic_0001>
module attributes {stable_mosaic.version = 11 : i64} {
  func.func @_mlp_kernel(%arg0: i32, %arg1: memref<256x16xf32, #tpu.memory_space<vmem>>, %arg2: memref<16x128xbf16, #tpu.memory_space<vmem>>, %arg3: memref<1x128xf32, #tpu.memory_space<vmem>>, %arg4: memref<128x32xbf16, #tpu.memory_space<vmem>>, %arg5: memref<1x32xf32, #tpu.memory_space<vmem>>, %arg6: memref<32x32xbf16, #tpu.memory_space<vmem>>, %arg7: memref<1x32xf32, #tpu.memory_space<vmem>>, %arg8: memref<32x16xbf16, #tpu.memory_space<vmem>>, %arg9: memref<1x16xf32, #tpu.memory_space<vmem>>, %arg10: memref<16x128xbf16, #tpu.memory_space<vmem>>, %arg11: memref<1x128xf32, #tpu.memory_space<vmem>>, %arg12: memref<256x128xbf16, #tpu.memory_space<vmem>>) attributes {dimension_semantics = [#tpu.dimension_semantics<parallel>], iteration_bounds = array<i64: 1>, scalar_prefetch = 0 : i64, scratch_operands = 0 : i64, tpu.core_type = #tpu.core_type<tc>, window_params = [{transform_indices = @transform_0, window_bounds = array<i64: 256, 16>}, {pipeline_mode = #tpu.pipeline_mode<synchronous>, transform_indices = @transform_1, window_bounds = array<i64: 16, 128>}, {pipeline_mode = #tpu.pipeline_mode<synchronous>, transform_indices = @transform_2, window_bounds = array<i64: 1, 128>}, {pipeline_mode = #tpu.pipeline_mode<synchronous>, transform_indices = @transform_3, window_bounds = array<i64: 128, 32>}, {pipeline_mode = #tpu.pipeline_mode<synchronous>, transform_indices = @transform_4, window_bounds = array<i64: 1, 32>}, {pipeline_mode = #tpu.pipeline_mode<synchronous>, transform_indices = @transform_5, window_bounds = array<i64: 32, 32>}, {pipeline_mode = #tpu.pipeline_mode<synchronous>, transform_indices = @transform_6, window_bounds = array<i64: 1, 32>}, {pipeline_mode = #tpu.pipeline_mode<synchronous>, transform_indices = @transform_7, window_bounds = array<i64: 32, 16>}, {pipeline_mode = #tpu.pipeline_mode<synchronous>, transform_indices = @transform_8, window_bounds = array<i64: 1, 16>}, {pipeline_mode = #tpu.pipeline_mode<synchronous>, transform_indices = @transform_9, window_bounds = array<i64: 16, 128>}, {pipeline_mode = #tpu.pipeline_mode<synchronous>, transform_indices = @transform_10, window_bounds = array<i64: 1, 128>}, {transform_indices = @transform_11, window_bounds = array<i64: 256, 128>}]} {
    %c0 = arith.constant 0 : index
    %c0_0 = arith.constant 0 : index
    %0 = vector.load %arg1[%c0, %c0_0] : memref<256x16xf32, #tpu.memory_space<vmem>>, vector<256x16xf32>
    %1 = arith.truncf %0 : vector<256x16xf32> to vector<256x16xbf16>
    %c0_1 = arith.constant 0 : index
    %c0_2 = arith.constant 0 : index
    %2 = vector.load %arg2[%c0_1, %c0_2] : memref<16x128xbf16, #tpu.memory_space<vmem>>, vector<16x128xbf16>
    %cst = arith.constant dense<0.000000e+00> : vector<256x128xf32>
    %3 = tpu.matmul %1, %2, %cst {dimension_numbers = #tpu.dot_dimension_numbers<[1], [0], [0], [1], [0, 0, 1, 1], [], []>} : vector<256x16xbf16>, vector<16x128xbf16>, vector<256x128xf32> -> vector<256x128xf32>
    %c0_3 = arith.constant 0 : index
    %c0_4 = arith.constant 0 : index
    %4 = vector.load %arg3[%c0_3, %c0_4] : memref<1x128xf32, #tpu.memory_space<vmem>>, vector<1x128xf32>
    %5 = vector.broadcast %4 : vector<1x128xf32> to vector<256x128xf32>
    %6 = arith.addf %3, %5 : vector<256x128xf32>
    %cst_5 = arith.constant 0.000000e+00 : f32
    %7 = vector.broadcast %cst_5 : f32 to vector<256x128xf32>
    %8 = arith.maximumf %6, %7 : vector<256x128xf32>
    %9 = arith.truncf %8 : vector<256x128xf32> to vector<256x128xbf16>
    %c0_6 = arith.constant 0 : index
    %c0_7 = arith.constant 0 : index
    %10 = vector.load %arg4[%c0_6, %c0_7] : memref<128x32xbf16, #tpu.memory_space<vmem>>, vector<128x32xbf16>
    %cst_8 = arith.constant dense<0.000000e+00> : vector<256x32xf32>
    %11 = tpu.matmul %9, %10, %cst_8 {dimension_numbers = #tpu.dot_dimension_numbers<[1], [0], [0], [1], [0, 0, 1, 1], [], []>} : vector<256x128xbf16>, vector<128x32xbf16>, vector<256x32xf32> -> vector<256x32xf32>
    %c0_9 = arith.constant 0 : index
    %c0_10 = arith.constant 0 : index
    %12 = vector.load %arg5[%c0_9, %c0_10] : memref<1x32xf32, #tpu.memory_space<vmem>>, vector<1x32xf32>
    %13 = vector.broadcast %12 : vector<1x32xf32> to vector<256x32xf32>
    %14 = arith.addf %11, %13 : vector<256x32xf32>
    %cst_11 = arith.constant 0.000000e+00 : f32
    %15 = vector.broadcast %cst_11 : f32 to vector<256x32xf32>
    %16 = arith.maximumf %14, %15 : vector<256x32xf32>
    %17 = arith.truncf %16 : vector<256x32xf32> to vector<256x32xbf16>
    %c0_12 = arith.constant 0 : index
    %c0_13 = arith.constant 0 : index
    %18 = vector.load %arg6[%c0_12, %c0_13] : memref<32x32xbf16, #tpu.memory_space<vmem>>, vector<32x32xbf16>
    %cst_14 = arith.constant dense<0.000000e+00> : vector<256x32xf32>
    %19 = tpu.matmul %17, %18, %cst_14 {dimension_numbers = #tpu.dot_dimension_numbers<[1], [0], [0], [1], [0, 0, 1, 1], [], []>} : vector<256x32xbf16>, vector<32x32xbf16>, vector<256x32xf32> -> vector<256x32xf32>
    %c0_15 = arith.constant 0 : index
    %c0_16 = arith.constant 0 : index
    %20 = vector.load %arg7[%c0_15, %c0_16] : memref<1x32xf32, #tpu.memory_space<vmem>>, vector<1x32xf32>
    %21 = vector.broadcast %20 : vector<1x32xf32> to vector<256x32xf32>
    %22 = arith.addf %19, %21 : vector<256x32xf32>
    %cst_17 = arith.constant 0.000000e+00 : f32
    %23 = vector.broadcast %cst_17 : f32 to vector<256x32xf32>
    %24 = arith.maximumf %22, %23 : vector<256x32xf32>
    %25 = arith.truncf %24 : vector<256x32xf32> to vector<256x32xbf16>
    %c0_18 = arith.constant 0 : index
    %c0_19 = arith.constant 0 : index
    %26 = vector.load %arg8[%c0_18, %c0_19] : memref<32x16xbf16, #tpu.memory_space<vmem>>, vector<32x16xbf16>
    %cst_20 = arith.constant dense<0.000000e+00> : vector<256x16xf32>
    %27 = tpu.matmul %25, %26, %cst_20 {dimension_numbers = #tpu.dot_dimension_numbers<[1], [0], [0], [1], [0, 0, 1, 1], [], []>} : vector<256x32xbf16>, vector<32x16xbf16>, vector<256x16xf32> -> vector<256x16xf32>
    %c0_21 = arith.constant 0 : index
    %c0_22 = arith.constant 0 : index
    %28 = vector.load %arg9[%c0_21, %c0_22] : memref<1x16xf32, #tpu.memory_space<vmem>>, vector<1x16xf32>
    %29 = vector.broadcast %28 : vector<1x16xf32> to vector<256x16xf32>
    %30 = arith.addf %27, %29 : vector<256x16xf32>
    %cst_23 = arith.constant 0.000000e+00 : f32
    %31 = vector.broadcast %cst_23 : f32 to vector<256x16xf32>
    %32 = arith.maximumf %30, %31 : vector<256x16xf32>
    %33 = arith.truncf %32 : vector<256x16xf32> to vector<256x16xbf16>
    %c0_24 = arith.constant 0 : index
    %c0_25 = arith.constant 0 : index
    %34 = vector.load %arg10[%c0_24, %c0_25] : memref<16x128xbf16, #tpu.memory_space<vmem>>, vector<16x128xbf16>
    %cst_26 = arith.constant dense<0.000000e+00> : vector<256x128xf32>
    %35 = tpu.matmul %33, %34, %cst_26 {dimension_numbers = #tpu.dot_dimension_numbers<[1], [0], [0], [1], [0, 0, 1, 1], [], []>} : vector<256x16xbf16>, vector<16x128xbf16>, vector<256x128xf32> -> vector<256x128xf32>
    %c0_27 = arith.constant 0 : index
    %c0_28 = arith.constant 0 : index
    %36 = vector.load %arg11[%c0_27, %c0_28] : memref<1x128xf32, #tpu.memory_space<vmem>>, vector<1x128xf32>
    %37 = vector.broadcast %36 : vector<1x128xf32> to vector<256x128xf32>
    %38 = arith.addf %35, %37 : vector<256x128xf32>
    %39 = arith.negf %38 : vector<256x128xf32>
    %40 = math.exp %39 : vector<256x128xf32>
    %cst_29 = arith.constant 1.000000e+00 : f32
    %41 = vector.broadcast %cst_29 : f32 to vector<256x128xf32>
    %42 = arith.addf %41, %40 : vector<256x128xf32>
    %43 = arith.divf %41, %42 : vector<256x128xf32>
    %44 = arith.truncf %43 : vector<256x128xf32> to vector<256x128xbf16>
    %c0_30 = arith.constant 0 : index
    %c0_31 = arith.constant 0 : index
    %45 = vector.load %arg12[%c0_30, %c0_31] : memref<256x128xbf16, #tpu.memory_space<vmem>>, vector<256x128xbf16>
    tpu.vector_store %arg12[%c0_30, %c0_31], %44 {strides = array<i32>} : memref<256x128xbf16, #tpu.memory_space<vmem>>, vector<256x128xbf16>,
    return
  }
  func.func @transform_0(%arg0: i32) -> (i32, i32) {
    %c0_i32 = arith.constant 0 : i32
    %c0_i32_0 = arith.constant 0 : i32
    return %arg0, %c0_i32 : i32, i32
  }
  func.func @transform_1(%arg0: i32) -> (i32, i32) {
    %c0_i32 = arith.constant 0 : i32
    %c0_i32_0 = arith.constant 0 : i32
    %c0_i32_1 = arith.constant 0 : i32
    return %c0_i32, %c0_i32_0 : i32, i32
  }
  func.func @transform_2(%arg0: i32) -> (i32, i32) {
    %c0_i32 = arith.constant 0 : i32
    %c0_i32_0 = arith.constant 0 : i32
    %c0_i32_1 = arith.constant 0 : i32
    return %c0_i32, %c0_i32_0 : i32, i32
  }
  func.func @transform_3(%arg0: i32) -> (i32, i32) {
    %c0_i32 = arith.constant 0 : i32
    %c0_i32_0 = arith.constant 0 : i32
    %c0_i32_1 = arith.constant 0 : i32
    return %c0_i32, %c0_i32_0 : i32, i32
  }
  func.func @transform_4(%arg0: i32) -> (i32, i32) {
    %c0_i32 = arith.constant 0 : i32
    %c0_i32_0 = arith.constant 0 : i32
    %c0_i32_1 = arith.constant 0 : i32
    return %c0_i32, %c0_i32_0 : i32, i32
  }
  func.func @transform_5(%arg0: i32) -> (i32, i32) {
    %c0_i32 = arith.constant 0 : i32
    %c0_i32_0 = arith.constant 0 : i32
    %c0_i32_1 = arith.constant 0 : i32
    return %c0_i32, %c0_i32_0 : i32, i32
  }
  func.func @transform_6(%arg0: i32) -> (i32, i32) {
    %c0_i32 = arith.constant 0 : i32
    %c0_i32_0 = arith.constant 0 : i32
    %c0_i32_1 = arith.constant 0 : i32
    return %c0_i32, %c0_i32_0 : i32, i32
  }
  func.func @transform_7(%arg0: i32) -> (i32, i32) {
    %c0_i32 = arith.constant 0 : i32
    %c0_i32_0 = arith.constant 0 : i32
    %c0_i32_1 = arith.constant 0 : i32
    return %c0_i32, %c0_i32_0 : i32, i32
  }
  func.func @transform_8(%arg0: i32) -> (i32, i32) {
    %c0_i32 = arith.constant 0 : i32
    %c0_i32_0 = arith.constant 0 : i32
    %c0_i32_1 = arith.constant 0 : i32
    return %c0_i32, %c0_i32_0 : i32, i32
  }
  func.func @transform_9(%arg0: i32) -> (i32, i32) {
    %c0_i32 = arith.constant 0 : i32
    %c0_i32_0 = arith.constant 0 : i32
    %c0_i32_1 = arith.constant 0 : i32
    return %c0_i32, %c0_i32_0 : i32, i32
  }
  func.func @transform_10(%arg0: i32) -> (i32, i32) {
    %c0_i32 = arith.constant 0 : i32
    %c0_i32_0 = arith.constant 0 : i32
    %c0_i32_1 = arith.constant 0 : i32
    return %c0_i32, %c0_i32_0 : i32, i32
  }
  func.func @transform_11(%arg0: i32) -> (i32, i32) {
    %c0_i32 = arith.constant 0 : i32
    %c0_i32_0 = arith.constant 0 : i32
    return %arg0, %c0_i32 : i32, i32
  }
}

</mosaic_0001>

<llo_original>
// kernel: tpu_custom_call.1
$region0: #{tpu_custom_call.1}
  #allocation0 [shape = 'u32[]', space=smem, size = 0x4, offset = 0x4, fixed_abs, tag = 'smem constant byte address 0x4 - core index']
  #allocation1 [shape = 'u32[144,128]{1,0:T(1,128)}', space=vmem, size = 0x12000, scoped, tag = 'internal scratch']
  %s0 = inlined_call_operand.vmem [shape: f32[256,16], index: 0, kind: input, shape index: {}]
  %s1 = inlined_call_operand.vmem [shape: bf16[16,128], index: 1, kind: input, shape index: {}]
  %s2 = inlined_call_operand.vmem [shape: f32[1,128], index: 2, kind: input, shape index: {}]
  %s3 = inlined_call_operand.vmem [shape: bf16[128,32], index: 3, kind: input, shape index: {}]
  %s4 = inlined_call_operand.vmem [shape: f32[1,32], index: 4, kind: input, shape index: {}]
  %s5 = inlined_call_operand.vmem [shape: bf16[32,32], index: 5, kind: input, shape index: {}]
  %s6 = inlined_call_operand.vmem [shape: f32[1,32], index: 6, kind: input, shape index: {}]
  %s7 = inlined_call_operand.vmem [shape: bf16[32,16], index: 7, kind: input, shape index: {}]
  %s8 = inlined_call_operand.vmem [shape: f32[1,16], index: 8, kind: input, shape index: {}]
  %s9 = inlined_call_operand.vmem [shape: bf16[16,128], index: 9, kind: input, shape index: {}]
  %s10 = inlined_call_operand.vmem [shape: f32[1,128], index: 10, kind: input, shape index: {}]
  %s11 = inlined_call_operand.hbm [shape: bf16[256,128], index: 11, kind: output, shape index: {}]
  %s12 = sld [smem:[#allocation0]]
  $region54: #{tpu_custom_call.1} parent=0
    _
  %s14 = ssub.s32 1, %s12
  %s15 = scalar_select 0, %s14, %s12
  $region1: #{tpu_custom_call.1} parent=0
    #allocation2 [shape = 'u8[65536]{0}', space=vmem, size = 0x10000, scoped, tag = 'output window, operand 0, single buffered']
    #allocation3 [shape = 's32[1]{0}', space=sflag, size = 0x4, scoped, tag = 'scoped memory for tpu_custom_call.1']
    %16 = vsyncpa [#allocation3], 0
    // Predicated region
    $region2: #{tpu_custom_call.1} parent=1 // pred_check
      _
    $region3: #{tpu_custom_call.1} parent=1 // pred_check_branch
      %18 = sbr.rel (0) target = $region5
    $region4: #{tpu_custom_call.1} parent=1 // pred_region
      _
    $region5: #{tpu_custom_call.1} parent=1 // pred_fallthru
      _
    // Predicated region
    $region6: #{tpu_custom_call.1} parent=1 // pred_check
      _
    $region7: #{tpu_custom_call.1} parent=1 // pred_check_branch
      %20 = sbr.rel (0) target = $region9
    $region8: #{tpu_custom_call.1} parent=1 // pred_region
      _
    $region9: #{tpu_custom_call.1} parent=1 // pred_fallthru
      _
    // Predicated region
    $region10: #{tpu_custom_call.1} parent=1 // pred_check
      _
    $region11: #{tpu_custom_call.1} parent=1 // pred_check_branch
      %22 = sbr.rel (0) target = $region13
    $region12: #{tpu_custom_call.1} parent=1 // pred_region
      _
    $region13: #{tpu_custom_call.1} parent=1 // pred_fallthru
      _
    // Predicated region
    $region14: #{tpu_custom_call.1} parent=1 // pred_check
      _
    $region15: #{tpu_custom_call.1} parent=1 // pred_check_branch
      %24 = sbr.rel (0) target = $region17
    $region16: #{tpu_custom_call.1} parent=1 // pred_region
      _
    $region17: #{tpu_custom_call.1} parent=1 // pred_fallthru
      _
    // Predicated region
    $region18: #{tpu_custom_call.1} parent=1 // pred_check
      _
    $region19: #{tpu_custom_call.1} parent=1 // pred_check_branch
      %26 = sbr.rel (0) target = $region21
    $region20: #{tpu_custom_call.1} parent=1 // pred_region
      _
    $region21: #{tpu_custom_call.1} parent=1 // pred_fallthru
      _
    // Predicated region
    $region22: #{tpu_custom_call.1} parent=1 // pred_check
      _
    $region23: #{tpu_custom_call.1} parent=1 // pred_check_branch
      %28 = sbr.rel (0) target = $region25
    $region24: #{tpu_custom_call.1} parent=1 // pred_region
      _
    $region25: #{tpu_custom_call.1} parent=1 // pred_fallthru
      _
    // Predicated region
    $region26: #{tpu_custom_call.1} parent=1 // pred_check
      _
    $region27: #{tpu_custom_call.1} parent=1 // pred_check_branch
      %30 = sbr.rel (0) target = $region29
    $region28: #{tpu_custom_call.1} parent=1 // pred_region
      _
    $region29: #{tpu_custom_call.1} parent=1 // pred_fallthru
      _
    // Predicated region
    $region30: #{tpu_custom_call.1} parent=1 // pred_check
      _
    $region31: #{tpu_custom_call.1} parent=1 // pred_check_branch
      %32 = sbr.rel (0) target = $region33
    $region32: #{tpu_custom_call.1} parent=1 // pred_region
      _
    $region33: #{tpu_custom_call.1} parent=1 // pred_fallthru
      _
    // Predicated region
    $region34: #{tpu_custom_call.1} parent=1 // pred_check
      _
    $region35: #{tpu_custom_call.1} parent=1 // pred_check_branch
      %34 = sbr.rel (0) target = $region37
    $region36: #{tpu_custom_call.1} parent=1 // pred_region
      _
    $region37: #{tpu_custom_call.1} parent=1 // pred_fallthru
      _
    // Predicated region
    $region38: #{tpu_custom_call.1} parent=1 // pred_check
      _
    $region39: #{tpu_custom_call.1} parent=1 // pred_check_branch
      %36 = sbr.rel (0) target = $region41
    $region40: #{tpu_custom_call.1} parent=1 // pred_region
      _
    $region41: #{tpu_custom_call.1} parent=1 // pred_fallthru
      _
    // Predicated region
    $region42: #{tpu_custom_call.1} parent=1 // pred_check
      _
    $region43: #{tpu_custom_call.1} parent=1 // pred_check_branch
      %38 = sbr.rel (0) target = $region45
    $region44: #{tpu_custom_call.1} parent=1 // pred_region
      _
    $region45: #{tpu_custom_call.1} parent=1 // pred_fallthru
      _
    %v40 = vld [vmem:[%s0] sm:$0xff]
    %v41 = vld [vmem:[%s0 + $0x8] sm:$0xff]
    %v42 = vld [vmem:[%s0 + $0x10] sm:$0xff]
    %v43 = vld [vmem:[%s0 + $0x18] sm:$0xff]
    %v44 = vld [vmem:[%s0 + $0x20] sm:$0xff]
    %v45 = vld [vmem:[%s0 + $0x28] sm:$0xff]
    %v46 = vld [vmem:[%s0 + $0x30] sm:$0xff]
    %v47 = vld [vmem:[%s0 + $0x38] sm:$0xff]
    %v48 = vld [vmem:[%s0 + $0x40] sm:$0xff]
    %v49 = vld [vmem:[%s0 + $0x48] sm:$0xff]
    %v50 = vld [vmem:[%s0 + $0x50] sm:$0xff]
    %v51 = vld [vmem:[%s0 + $0x58] sm:$0xff]
    %v52 = vld [vmem:[%s0 + $0x60] sm:$0xff]
    %v53 = vld [vmem:[%s0 + $0x68] sm:$0xff]
    %v54 = vld [vmem:[%s0 + $0x70] sm:$0xff]
    %v55 = vld [vmem:[%s0 + $0x78] sm:$0xff]
    %v56 = vld [vmem:[%s0 + $0x80] sm:$0xff]
    %v57 = vld [vmem:[%s0 + $0x88] sm:$0xff]
    %v58 = vld [vmem:[%s0 + $0x90] sm:$0xff]
    %v59 = vld [vmem:[%s0 + $0x98] sm:$0xff]
    %v60 = vld [vmem:[%s0 + $0xa0] sm:$0xff]
    %v61 = vld [vmem:[%s0 + $0xa8] sm:$0xff]
    %v62 = vld [vmem:[%s0 + $0xb0] sm:$0xff]
    %v63 = vld [vmem:[%s0 + $0xb8] sm:$0xff]
    %v64 = vld [vmem:[%s0 + $0xc0] sm:$0xff]
    %v65 = vld [vmem:[%s0 + $0xc8] sm:$0xff]
    %v66 = vld [vmem:[%s0 + $0xd0] sm:$0xff]
    %v67 = vld [vmem:[%s0 + $0xd8] sm:$0xff]
    %v68 = vld [vmem:[%s0 + $0xe0] sm:$0xff]
    %v69 = vld [vmem:[%s0 + $0xe8] sm:$0xff]
    %v70 = vld [vmem:[%s0 + $0xf0] sm:$0xff]
    %v71 = vld [vmem:[%s0 + $0xf8] sm:$0xff]
    %v72 = vpack.c.bf16 %v41, %v40
    %v73 = vpack.c.bf16 %v43, %v42
    %v74 = vpack.c.bf16 %v45, %v44
    %v75 = vpack.c.bf16 %v47, %v46
    %v76 = vpack.c.bf16 %v49, %v48
    %v77 = vpack.c.bf16 %v51, %v50
    %v78 = vpack.c.bf16 %v53, %v52
    %v79 = vpack.c.bf16 %v55, %v54
    %v80 = vpack.c.bf16 %v57, %v56
    %v81 = vpack.c.bf16 %v59, %v58
    %v82 = vpack.c.bf16 %v61, %v60
    %v83 = vpack.c.bf16 %v63, %v62
    %v84 = vpack.c.bf16 %v65, %v64
    %v85 = vpack.c.bf16 %v67, %v66
    %v86 = vpack.c.bf16 %v69, %v68
    %v87 = vpack.c.bf16 %v71, %v70
    %v88 = vld [vmem:[%s1] sm:$0xf]
    %v89 = vld [vmem:[%s1 + $0x4] sm:$0xf]
    %v90 = vld [vmem:[%s2] sm:$0x1]
    %v92 = vlaneseq
    %v93 = vshrl.u32 %v92, 7
    %v94 = vsub.s32 0, %v93
    %v95 = vrot.slane %v90, %v94
    %v99 = vunpack.c.l.b16 %v88
    %v100 = vunpack.c.l.b16 %v89
    %v101 = vpack.c.b16 %v100, %v99
    %vm103 = vcmask 130048
    %v105 = vsel %vm103, %v72, 0
    %v108 = vsel %vm103, %v73, 0
    %v111 = vsel %vm103, %v74, 0
    %v114 = vsel %vm103, %v75, 0
    %v117 = vsel %vm103, %v76, 0
    %v120 = vsel %vm103, %v77, 0
    %v123 = vsel %vm103, %v78, 0
    %v126 = vsel %vm103, %v79, 0
    %v129 = vsel %vm103, %v80, 0
    %v132 = vsel %vm103, %v81, 0
    %v135 = vsel %vm103, %v82, 0
    %v138 = vsel %vm103, %v83, 0
    %v141 = vsel %vm103, %v84, 0
    %v144 = vsel %vm103, %v85, 0
    %v147 = vsel %vm103, %v86, 0
    %v150 = vsel %vm103, %v87, 0
    %152 = vmatprep.subr.bf16.mxu0 0
    %153 = vmatpush1.bf16.msra.mxu0 %v101
    %154 = vmatprep.subr.bf16.mxu0 0
    %155 = vmatpush1.bf16.msra.mxu0 0
    %156 = vmatprep.subr.bf16.mxu0 0
    %157 = vmatpush1.bf16.msra.mxu0 0
    %158 = vmatprep.subr.bf16.mxu0 0
    %159 = vmatpush1.bf16.msra.mxu0 0
    %160 = vmatprep.subr.bf16.mxu0 0
    %161 = vmatpush1.bf16.msra.mxu0 0
    %162 = vmatprep.subr.bf16.mxu0 0
    %163 = vmatpush1.bf16.msra.mxu0 0
    %164 = vmatprep.subr.bf16.mxu0 0
    %165 = vmatpush1.bf16.msra.mxu0 0
    %166 = vmatprep.subr.bf16.mxu0 0
    %167 = vmatpush1.bf16.msra.mxu0 0
    %168 = vmatprep.subr.bf16.mxu0 0
    %169 = vmatpush1.bf16.msra.mxu0 0
    %170 = vmatprep.subr.bf16.mxu0 0
    %171 = vmatpush1.bf16.msra.mxu0 0
    %172 = vmatprep.subr.bf16.mxu0 0
    %173 = vmatpush1.bf16.msra.mxu0 0
    %174 = vmatprep.subr.bf16.mxu0 0
    %175 = vmatpush1.bf16.msra.mxu0 0
    %176 = vmatprep.subr.bf16.mxu0 0
    %177 = vmatpush1.bf16.msra.mxu0 0
    %178 = vmatprep.subr.bf16.mxu0 0
    %179 = vmatpush1.bf16.msra.mxu0 0
    %180 = vmatprep.subr.bf16.mxu0 0
    %181 = vmatpush1.bf16.msra.mxu0 0
    %182 = vmatprep.subr.bf16.mxu0 0
    %183 = vmatpush1.bf16.msra.mxu0 0
    %184 = vmatprep.mubr.bf16.mxu0 0
    %185 = vmatmul.mubr.bf16.gmra.mrb[0].mxu0 %v105
    %v186 = vpop.f32.mrb[0].mxu0
    %v187 = vadd.f32 %v95, %v186
    %v188 = vpop.f32.mrb[0].mxu0
    %v189 = vpop.f32.mrb[0].mxu0
    %v190 = vadd.f32 %v95, %v189
    %v191 = vpop.f32.mrb[0].mxu0
    %192 = vmatprep.mubr.bf16.mxu0 0
    %193 = vmatmul.mubr.bf16.gmra.mrb[0].mxu0 %v108
    %v194 = vpop.f32.mrb[0].mxu0
    %v195 = vadd.f32 %v95, %v194
    %v196 = vpop.f32.mrb[0].mxu0
    %v197 = vpop.f32.mrb[0].mxu0
    %v198 = vadd.f32 %v95, %v197
    %v199 = vpop.f32.mrb[0].mxu0
    %200 = vmatprep.mubr.bf16.mxu0 0
    %201 = vmatmul.mubr.bf16.gmra.mrb[0].mxu0 %v111
    %v202 = vpop.f32.mrb[0].mxu0
    %v203 = vadd.f32 %v95, %v202
    %v204 = vpop.f32.mrb[0].mxu0
    %v205 = vpop.f32.mrb[0].mxu0
    %v206 = vadd.f32 %v95, %v205
    %v207 = vpop.f32.mrb[0].mxu0
    %208 = vmatprep.mubr.bf16.mxu0 0
    %209 = vmatmul.mubr.bf16.gmra.mrb[0].mxu0 %v114
    %v210 = vpop.f32.mrb[0].mxu0
    %v211 = vadd.f32 %v95, %v210
    %v212 = vpop.f32.mrb[0].mxu0
    %v213 = vpop.f32.mrb[0].mxu0
    %v214 = vadd.f32 %v95, %v213
    %v215 = vpop.f32.mrb[0].mxu0
    %216 = vmatprep.mubr.bf16.mxu0 0
    %217 = vmatmul.mubr.bf16.gmra.mrb[0].mxu0 %v117
    %v218 = vpop.f32.mrb[0].mxu0
    %v219 = vadd.f32 %v95, %v218
    %v220 = vpop.f32.mrb[0].mxu0
    %v221 = vpop.f32.mrb[0].mxu0
    %v222 = vadd.f32 %v95, %v221
    %v223 = vpop.f32.mrb[0].mxu0
    %224 = vmatprep.mubr.bf16.mxu0 0
    %225 = vmatmul.mubr.bf16.gmra.mrb[0].mxu0 %v120
    %v226 = vpop.f32.mrb[0].mxu0
    %v227 = vadd.f32 %v95, %v226
    %v228 = vpop.f32.mrb[0].mxu0
    %v229 = vpop.f32.mrb[0].mxu0
    %v230 = vadd.f32 %v95, %v229
    %v231 = vpop.f32.mrb[0].mxu0
    %232 = vmatprep.mubr.bf16.mxu0 0
    %233 = vmatmul.mubr.bf16.gmra.mrb[0].mxu0 %v123
    %v234 = vpop.f32.mrb[0].mxu0
    %v235 = vadd.f32 %v95, %v234
    %v236 = vpop.f32.mrb[0].mxu0
    %v237 = vpop.f32.mrb[0].mxu0
    %v238 = vadd.f32 %v95, %v237
    %v239 = vpop.f32.mrb[0].mxu0
    %240 = vmatprep.mubr.bf16.mxu0 0
    %241 = vmatmul.mubr.bf16.gmra.mrb[0].mxu0 %v126
    %v242 = vpop.f32.mrb[0].mxu0
    %v243 = vadd.f32 %v95, %v242
    %v244 = vpop.f32.mrb[0].mxu0
    %v245 = vpop.f32.mrb[0].mxu0
    %v246 = vadd.f32 %v95, %v245
    %v247 = vpop.f32.mrb[0].mxu0
    %248 = vmatprep.mubr.bf16.mxu0 0
    %249 = vmatmul.mubr.bf16.gmra.mrb[0].mxu0 %v129
    %v250 = vpop.f32.mrb[0].mxu0
    %v251 = vadd.f32 %v95, %v250
    %v252 = vpop.f32.mrb[0].mxu0
    %v253 = vpop.f32.mrb[0].mxu0
    %v254 = vadd.f32 %v95, %v253
    %v255 = vpop.f32.mrb[0].mxu0
    %256 = vmatprep.mubr.bf16.mxu0 0
    %257 = vmatmul.mubr.bf16.gmra.mrb[0].mxu0 %v132
    %v258 = vpop.f32.mrb[0].mxu0
    %v259 = vadd.f32 %v95, %v258
    %v260 = vpop.f32.mrb[0].mxu0
    %v261 = vpop.f32.mrb[0].mxu0
    %v262 = vadd.f32 %v95, %v261
    %v263 = vpop.f32.mrb[0].mxu0
    %264 = vmatprep.mubr.bf16.mxu0 0
    %265 = vmatmul.mubr.bf16.gmra.mrb[0].mxu0 %v135
    %v266 = vpop.f32.mrb[0].mxu0
    %v267 = vadd.f32 %v95, %v266
    %v268 = vpop.f32.mrb[0].mxu0
    %v269 = vpop.f32.mrb[0].mxu0
    %v270 = vadd.f32 %v95, %v269
    %v271 = vpop.f32.mrb[0].mxu0
    %272 = vmatprep.mubr.bf16.mxu0 0
    %273 = vmatmul.mubr.bf16.gmra.mrb[0].mxu0 %v138
    %v274 = vpop.f32.mrb[0].mxu0
    %v275 = vadd.f32 %v95, %v274
    %v276 = vpop.f32.mrb[0].mxu0
    %v277 = vpop.f32.mrb[0].mxu0
    %v278 = vadd.f32 %v95, %v277
    %v279 = vpop.f32.mrb[0].mxu0
    %280 = vmatprep.mubr.bf16.mxu0 0
    %281 = vmatmul.mubr.bf16.gmra.mrb[0].mxu0 %v141
    %v282 = vpop.f32.mrb[0].mxu0
    %v283 = vadd.f32 %v95, %v282
    %v284 = vpop.f32.mrb[0].mxu0
    %v285 = vpop.f32.mrb[0].mxu0
    %v286 = vadd.f32 %v95, %v285
    %v287 = vpop.f32.mrb[0].mxu0
    %288 = vmatprep.mubr.bf16.mxu0 0
    %289 = vmatmul.mubr.bf16.gmra.mrb[0].mxu0 %v144
    %v290 = vpop.f32.mrb[0].mxu0
    %v291 = vadd.f32 %v95, %v290
    %v292 = vpop.f32.mrb[0].mxu0
    %v293 = vpop.f32.mrb[0].mxu0
    %v294 = vadd.f32 %v95, %v293
    %v295 = vpop.f32.mrb[0].mxu0
    %296 = vmatprep.mubr.bf16.mxu0 0
    %297 = vmatmul.mubr.bf16.gmra.mrb[0].mxu0 %v147
    %v298 = vpop.f32.mrb[0].mxu0
    %v299 = vadd.f32 %v95, %v298
    %v300 = vpop.f32.mrb[0].mxu0
    %v301 = vpop.f32.mrb[0].mxu0
    %v302 = vadd.f32 %v95, %v301
    %v303 = vpop.f32.mrb[0].mxu0
    %304 = vmatprep.mubr.bf16.mxu0 0
    %305 = vmatmul.mubr.bf16.gmra.mrb[0].mxu0 %v150
    %v306 = vpop.f32.mrb[0].mxu0
    %v307 = vadd.f32 %v95, %v306
    %v308 = vpop.f32.mrb[0].mxu0
    %v309 = vpop.f32.mrb[0].mxu0
    %v310 = vadd.f32 %v95, %v309
    %v311 = vpop.f32.mrb[0].mxu0
    %312 = vdwg.mxu0
    %v313 = vmax.f32 %v187, 0.0
    %v314 = vmax.f32 %v190, 0.0
    %v315 = vmax.f32 %v195, 0.0
    %v316 = vmax.f32 %v198, 0.0
    %v317 = vmax.f32 %v203, 0.0
    %v318 = vmax.f32 %v206, 0.0
    %v319 = vmax.f32 %v211, 0.0
    %v320 = vmax.f32 %v214, 0.0
    %v321 = vmax.f32 %v219, 0.0
    %v322 = vmax.f32 %v222, 0.0
    %v323 = vmax.f32 %v227, 0.0
    %v324 = vmax.f32 %v230, 0.0
    %v325 = vmax.f32 %v235, 0.0
    %v326 = vmax.f32 %v238, 0.0
    %v327 = vmax.f32 %v243, 0.0
    %v328 = vmax.f32 %v246, 0.0
    %v329 = vmax.f32 %v251, 0.0
    %v330 = vmax.f32 %v254, 0.0
    %v331 = vmax.f32 %v259, 0.0
    %v332 = vmax.f32 %v262, 0.0
    %v333 = vmax.f32 %v267, 0.0
    %v334 = vmax.f32 %v270, 0.0
    %v335 = vmax.f32 %v275, 0.0
    %v336 = vmax.f32 %v278, 0.0
    %v337 = vmax.f32 %v283, 0.0
    %v338 = vmax.f32 %v286, 0.0
    %v339 = vmax.f32 %v291, 0.0
    %v340 = vmax.f32 %v294, 0.0
    %v341 = vmax.f32 %v299, 0.0
    %v342 = vmax.f32 %v302, 0.0
    %v343 = vmax.f32 %v307, 0.0
    %v344 = vmax.f32 %v310, 0.0
    %v345 = vpack.c.bf16 %v314, %v313
    %v346 = vpack.c.bf16 %v316, %v315
    %v347 = vpack.c.bf16 %v318, %v317
    %v348 = vpack.c.bf16 %v320, %v319
    %v349 = vpack.c.bf16 %v322, %v321
    %v350 = vpack.c.bf16 %v324, %v323
    %v351 = vpack.c.bf16 %v326, %v325
    %v352 = vpack.c.bf16 %v328, %v327
    %v353 = vpack.c.bf16 %v330, %v329
    %v354 = vpack.c.bf16 %v332, %v331
    %v355 = vpack.c.bf16 %v334, %v333
    %v356 = vpack.c.bf16 %v336, %v335
    %v357 = vpack.c.bf16 %v338, %v337
    %v358 = vpack.c.bf16 %v340, %v339
    %v359 = vpack.c.bf16 %v342, %v341
    %v360 = vpack.c.bf16 %v344, %v343
    %v361 = vld [vmem:[%s3] sm:$0xf]
    %v362 = vld [vmem:[%s3 + $0x4] sm:$0xf]
    %v363 = vld [vmem:[%s3 + $0x8] sm:$0xf]
    %v364 = vld [vmem:[%s3 + $0xc] sm:$0xf]
    %v365 = vld [vmem:[%s3 + $0x10] sm:$0xf]
    %v366 = vld [vmem:[%s3 + $0x14] sm:$0xf]
    %v367 = vld [vmem:[%s3 + $0x18] sm:$0xf]
    %v368 = vld [vmem:[%s3 + $0x1c] sm:$0xf]
    %v369 = vld [vmem:[%s3 + $0x20] sm:$0xf]
    %v370 = vld [vmem:[%s3 + $0x24] sm:$0xf]
    %v371 = vld [vmem:[%s3 + $0x28] sm:$0xf]
    %v372 = vld [vmem:[%s3 + $0x2c] sm:$0xf]
    %v373 = vld [vmem:[%s3 + $0x30] sm:$0xf]
    %v374 = vld [vmem:[%s3 + $0x34] sm:$0xf]
    %v375 = vld [vmem:[%s3 + $0x38] sm:$0xf]
    %v376 = vld [vmem:[%s3 + $0x3c] sm:$0xf]
    %v377 = vld [vmem:[%s4] sm:$0x1]
    %v379 = vlaneseq
    %v380 = vshrl.u32 %v379, 7
    %v381 = vsub.s32 0, %v380
    %v382 = vrot.slane %v377, %v381
    %v400 = vunpack.c.l.b16 %v361
    %v401 = vunpack.c.l.b16 %v362
    %v402 = vunpack.c.l.b16 %v363
    %v403 = vunpack.c.l.b16 %v364
    %v404 = vunpack.c.l.b16 %v365
    %v405 = vunpack.c.l.b16 %v366
    %v406 = vunpack.c.l.b16 %v367
    %v407 = vunpack.c.l.b16 %v368
    %v408 = vunpack.c.l.b16 %v369
    %v409 = vunpack.c.l.b16 %v370
    %v410 = vunpack.c.l.b16 %v371
    %v411 = vunpack.c.l.b16 %v372
    %v412 = vunpack.c.l.b16 %v373
    %v413 = vunpack.c.l.b16 %v374
    %v414 = vunpack.c.l.b16 %v375
    %v415 = vunpack.c.l.b16 %v376
    %v416 = vpack.c.b16 %v401, %v400
    %v417 = vpack.c.b16 %v403, %v402
    %v418 = vpack.c.b16 %v405, %v404
    %v419 = vpack.c.b16 %v407, %v406
    %v420 = vpack.c.b16 %v409, %v408
    %v421 = vpack.c.b16 %v411, %v410
    %v422 = vpack.c.b16 %v413, %v412
    %v423 = vpack.c.b16 %v415, %v414
    %432 = vmatprep.subr.bf16.mxu0 0
    %433 = vmatpush1.bf16.msra.mxu0 %v416
    %434 = vmatprep.subr.bf16.mxu0 0
    %435 = vmatpush1.bf16.msra.mxu0 %v417
    %436 = vmatprep.subr.bf16.mxu0 0
    %437 = vmatpush1.bf16.msra.mxu0 %v418
    %438 = vmatprep.subr.bf16.mxu0 0
    %439 = vmatpush1.bf16.msra.mxu0 %v419
    %440 = vmatprep.subr.bf16.mxu0 0
    %441 = vmatpush1.bf16.msra.mxu0 %v420
    %442 = vmatprep.subr.bf16.mxu0 0
    %443 = vmatpush1.bf16.msra.mxu0 %v421
    %444 = vmatprep.subr.bf16.mxu0 0
    %445 = vmatpush1.bf16.msra.mxu0 %v422
    %446 = vmatprep.subr.bf16.mxu0 0
    %447 = vmatpush1.bf16.msra.mxu0 %v423
    %448 = vmatprep.subr.bf16.mxu0 0
    %449 = vmatpush1.bf16.msra.mxu0 0
    %450 = vmatprep.subr.bf16.mxu0 0
    %451 = vmatpush1.bf16.msra.mxu0 0
    %452 = vmatprep.subr.bf16.mxu0 0
    %453 = vmatpush1.bf16.msra.mxu0 0
    %454 = vmatprep.subr.bf16.mxu0 0
    %455 = vmatpush1.bf16.msra.mxu0 0
    %456 = vmatprep.subr.bf16.mxu0 0
    %457 = vmatpush1.bf16.msra.mxu0 0
    %458 = vmatprep.subr.bf16.mxu0 0
    %459 = vmatpush1.bf16.msra.mxu0 0
    %460 = vmatprep.subr.bf16.mxu0 0
    %461 = vmatpush1.bf16.msra.mxu0 0
    %462 = vmatprep.subr.bf16.mxu0 0
    %463 = vmatpush1.bf16.msra.mxu0 0
    %464 = vmatprep.mubr.bf16.mxu0 0
    %465 = vmatmul.mubr.bf16.gmra.mrb[0].mxu0 %v345
    %v466 = vpop.f32.mrb[0].mxu0
    %v467 = vadd.f32 %v382, %v466
    %v468 = vpop.f32.mrb[0].mxu0
    %v469 = vpop.f32.mrb[0].mxu0
    %v470 = vadd.f32 %v382, %v469
    %v471 = vpop.f32.mrb[0].mxu0
    %472 = vmatprep.mubr.bf16.mxu0 0
    %473 = vmatmul.mubr.bf16.gmra.mrb[0].mxu0 %v346
    %v474 = vpop.f32.mrb[0].mxu0
    %v475 = vadd.f32 %v382, %v474
    %v476 = vpop.f32.mrb[0].mxu0
    %v477 = vpop.f32.mrb[0].mxu0
    %v478 = vadd.f32 %v382, %v477
    %v479 = vpop.f32.mrb[0].mxu0
    %480 = vmatprep.mubr.bf16.mxu0 0
    %481 = vmatmul.mubr.bf16.gmra.mrb[0].mxu0 %v347
    %v482 = vpop.f32.mrb[0].mxu0
    %v483 = vadd.f32 %v382, %v482
    %v484 = vpop.f32.mrb[0].mxu0
    %v485 = vpop.f32.mrb[0].mxu0
    %v486 = vadd.f32 %v382, %v485
    %v487 = vpop.f32.mrb[0].mxu0
    %488 = vmatprep.mubr.bf16.mxu0 0
    %489 = vmatmul.mubr.bf16.gmra.mrb[0].mxu0 %v348
    %v490 = vpop.f32.mrb[0].mxu0
    %v491 = vadd.f32 %v382, %v490
    %v492 = vpop.f32.mrb[0].mxu0
    %v493 = vpop.f32.mrb[0].mxu0
    %v494 = vadd.f32 %v382, %v493
    %v495 = vpop.f32.mrb[0].mxu0
    %496 = vmatprep.mubr.bf16.mxu0 0
    %497 = vmatmul.mubr.bf16.gmra.mrb[0].mxu0 %v349
    %v498 = vpop.f32.mrb[0].mxu0
    %v499 = vadd.f32 %v382, %v498
    %v500 = vpop.f32.mrb[0].mxu0
    %v501 = vpop.f32.mrb[0].mxu0
    %v502 = vadd.f32 %v382, %v501
    %v503 = vpop.f32.mrb[0].mxu0
    %504 = vmatprep.mubr.bf16.mxu0 0
    %505 = vmatmul.mubr.bf16.gmra.mrb[0].mxu0 %v350
    %v506 = vpop.f32.mrb[0].mxu0
    %v507 = vadd.f32 %v382, %v506
    %v508 = vpop.f32.mrb[0].mxu0
    %v509 = vpop.f32.mrb[0].mxu0
    %v510 = vadd.f32 %v382, %v509
    %v511 = vpop.f32.mrb[0].mxu0
    %512 = vmatprep.mubr.bf16.mxu0 0
    %513 = vmatmul.mubr.bf16.gmra.mrb[0].mxu0 %v351
    %v514 = vpop.f32.mrb[0].mxu0
    %v515 = vadd.f32 %v382, %v514
    %v516 = vpop.f32.mrb[0].mxu0
    %v517 = vpop.f32.mrb[0].mxu0
    %v518 = vadd.f32 %v382, %v517
    %v519 = vpop.f32.mrb[0].mxu0
    %520 = vmatprep.mubr.bf16.mxu0 0
    %521 = vmatmul.mubr.bf16.gmra.mrb[0].mxu0 %v352
    %v522 = vpop.f32.mrb[0].mxu0
    %v523 = vadd.f32 %v382, %v522
    %v524 = vpop.f32.mrb[0].mxu0
    %v525 = vpop.f32.mrb[0].mxu0
    %v526 = vadd.f32 %v382, %v525
    %v527 = vpop.f32.mrb[0].mxu0
    %528 = vmatprep.mubr.bf16.mxu0 0
    %529 = vmatmul.mubr.bf16.gmra.mrb[0].mxu0 %v353
    %v530 = vpop.f32.mrb[0].mxu0
    %v531 = vadd.f32 %v382, %v530
    %v532 = vpop.f32.mrb[0].mxu0
    %v533 = vpop.f32.mrb[0].mxu0
    %v534 = vadd.f32 %v382, %v533
    %v535 = vpop.f32.mrb[0].mxu0
    %536 = vmatprep.mubr.bf16.mxu0 0
    %537 = vmatmul.mubr.bf16.gmra.mrb[0].mxu0 %v354
    %v538 = vpop.f32.mrb[0].mxu0
    %v539 = vadd.f32 %v382, %v538
    %v540 = vpop.f32.mrb[0].mxu0
    %v541 = vpop.f32.mrb[0].mxu0
    %v542 = vadd.f32 %v382, %v541
    %v543 = vpop.f32.mrb[0].mxu0
    %544 = vmatprep.mubr.bf16.mxu0 0
    %545 = vmatmul.mubr.bf16.gmra.mrb[0].mxu0 %v355
    %v546 = vpop.f32.mrb[0].mxu0
    %v547 = vadd.f32 %v382, %v546
    %v548 = vpop.f32.mrb[0].mxu0
    %v549 = vpop.f32.mrb[0].mxu0
    %v550 = vadd.f32 %v382, %v549
    %v551 = vpop.f32.mrb[0].mxu0
    %552 = vmatprep.mubr.bf16.mxu0 0
    %553 = vmatmul.mubr.bf16.gmra.mrb[0].mxu0 %v356
    %v554 = vpop.f32.mrb[0].mxu0
    %v555 = vadd.f32 %v382, %v554
    %v556 = vpop.f32.mrb[0].mxu0
    %v557 = vpop.f32.mrb[0].mxu0
    %v558 = vadd.f32 %v382, %v557
    %v559 = vpop.f32.mrb[0].mxu0
    %560 = vmatprep.mubr.bf16.mxu0 0
    %561 = vmatmul.mubr.bf16.gmra.mrb[0].mxu0 %v357
    %v562 = vpop.f32.mrb[0].mxu0
    %v563 = vadd.f32 %v382, %v562
    %v564 = vpop.f32.mrb[0].mxu0
    %v565 = vpop.f32.mrb[0].mxu0
    %v566 = vadd.f32 %v382, %v565
    %v567 = vpop.f32.mrb[0].mxu0
    %568 = vmatprep.mubr.bf16.mxu0 0
    %569 = vmatmul.mubr.bf16.gmra.mrb[0].mxu0 %v358
    %v570 = vpop.f32.mrb[0].mxu0
    %v571 = vadd.f32 %v382, %v570
    %v572 = vpop.f32.mrb[0].mxu0
    %v573 = vpop.f32.mrb[0].mxu0
    %v574 = vadd.f32 %v382, %v573
    %v575 = vpop.f32.mrb[0].mxu0
    %576 = vmatprep.mubr.bf16.mxu0 0
    %577 = vmatmul.mubr.bf16.gmra.mrb[0].mxu0 %v359
    %v578 = vpop.f32.mrb[0].mxu0
    %v579 = vadd.f32 %v382, %v578
    %v580 = vpop.f32.mrb[0].mxu0
    %v581 = vpop.f32.mrb[0].mxu0
    %v582 = vadd.f32 %v382, %v581
    %v583 = vpop.f32.mrb[0].mxu0
    %584 = vmatprep.mubr.bf16.mxu0 0
    %585 = vmatmul.mubr.bf16.gmra.mrb[0].mxu0 %v360
    %v586 = vpop.f32.mrb[0].mxu0
    %v587 = vadd.f32 %v382, %v586
    %v588 = vpop.f32.mrb[0].mxu0
    %v589 = vpop.f32.mrb[0].mxu0
    %v590 = vadd.f32 %v382, %v589
    %v591 = vpop.f32.mrb[0].mxu0
    %592 = vdwg.mxu0
    %v593 = vmax.f32 %v467, 0.0
    %v594 = vmax.f32 %v470, 0.0
    %v595 = vmax.f32 %v475, 0.0
    %v596 = vmax.f32 %v478, 0.0
    %v597 = vmax.f32 %v483, 0.0
    %v598 = vmax.f32 %v486, 0.0
    %v599 = vmax.f32 %v491, 0.0
    %v600 = vmax.f32 %v494, 0.0
    %v601 = vmax.f32 %v499, 0.0
    %v602 = vmax.f32 %v502, 0.0
    %v603 = vmax.f32 %v507, 0.0
    %v604 = vmax.f32 %v510, 0.0
    %v605 = vmax.f32 %v515, 0.0
    %v606 = vmax.f32 %v518, 0.0
    %v607 = vmax.f32 %v523, 0.0
    %v608 = vmax.f32 %v526, 0.0
    %v609 = vmax.f32 %v531, 0.0
    %v610 = vmax.f32 %v534, 0.0
    %v611 = vmax.f32 %v539, 0.0
    %v612 = vmax.f32 %v542, 0.0
    %v613 = vmax.f32 %v547, 0.0
    %v614 = vmax.f32 %v550, 0.0
    %v615 = vmax.f32 %v555, 0.0
    %v616 = vmax.f32 %v558, 0.0
    %v617 = vmax.f32 %v563, 0.0
    %v618 = vmax.f32 %v566, 0.0
    %v619 = vmax.f32 %v571, 0.0
    %v620 = vmax.f32 %v574, 0.0
    %v621 = vmax.f32 %v579, 0.0
    %v622 = vmax.f32 %v582, 0.0
    %v623 = vmax.f32 %v587, 0.0
    %v624 = vmax.f32 %v590, 0.0
    %v625 = vpack.c.bf16 %v594, %v593
    %v626 = vpack.c.bf16 %v596, %v595
    %v627 = vpack.c.bf16 %v598, %v597
    %v628 = vpack.c.bf16 %v600, %v599
    %v629 = vpack.c.bf16 %v602, %v601
    %v630 = vpack.c.bf16 %v604, %v603
    %v631 = vpack.c.bf16 %v606, %v605
    %v632 = vpack.c.bf16 %v608, %v607
    %v633 = vpack.c.bf16 %v610, %v609
    %v634 = vpack.c.bf16 %v612, %v611
    %v635 = vpack.c.bf16 %v614, %v613
    %v636 = vpack.c.bf16 %v616, %v615
    %v637 = vpack.c.bf16 %v618, %v617
    %v638 = vpack.c.bf16 %v620, %v619
    %v639 = vpack.c.bf16 %v622, %v621
    %v640 = vpack.c.bf16 %v624, %v623
    %v641 = vld [vmem:[%s5] sm:$0xf]
    %v642 = vld [vmem:[%s5 + $0x4] sm:$0xf]
    %v643 = vld [vmem:[%s5 + $0x8] sm:$0xf]
    %v644 = vld [vmem:[%s5 + $0xc] sm:$0xf]
    %v645 = vld [vmem:[%s6] sm:$0x1]
    %v647 = vlaneseq
    %v648 = vshrl.u32 %v647, 7
    %v649 = vsub.s32 0, %v648
    %v650 = vrot.slane %v645, %v649
    %v656 = vunpack.c.l.b16 %v641
    %v657 = vunpack.c.l.b16 %v642
    %v658 = vunpack.c.l.b16 %v643
    %v659 = vunpack.c.l.b16 %v644
    %v660 = vpack.c.b16 %v657, %v656
    %v661 = vpack.c.b16 %v659, %v658
    %vm664 = vcmask 261120
    %v666 = vsel %vm664, %v625, 0
    %v669 = vsel %vm664, %v626, 0
    %v672 = vsel %vm664, %v627, 0
    %v675 = vsel %vm664, %v628, 0
    %v678 = vsel %vm664, %v629, 0
    %v681 = vsel %vm664, %v630, 0
    %v684 = vsel %vm664, %v631, 0
    %v687 = vsel %vm664, %v632, 0
    %v690 = vsel %vm664, %v633, 0
    %v693 = vsel %vm664, %v634, 0
    %v696 = vsel %vm664, %v635, 0
    %v699 = vsel %vm664, %v636, 0
    %v702 = vsel %vm664, %v637, 0
    %v705 = vsel %vm664, %v638, 0
    %v708 = vsel %vm664, %v639, 0
    %v711 = vsel %vm664, %v640, 0
    %713 = vmatprep.subr.bf16.mxu0 0
    %714 = vmatpush1.bf16.msra.mxu0 %v660
    %715 = vmatprep.subr.bf16.mxu0 0
    %716 = vmatpush1.bf16.msra.mxu0 %v661
    %717 = vmatprep.subr.bf16.mxu0 0
    %718 = vmatpush1.bf16.msra.mxu0 0
    %719 = vmatprep.subr.bf16.mxu0 0
    %720 = vmatpush1.bf16.msra.mxu0 0
    %721 = vmatprep.subr.bf16.mxu0 0
    %722 = vmatpush1.bf16.msra.mxu0 0
    %723 = vmatprep.subr.bf16.mxu0 0
    %724 = vmatpush1.bf16.msra.mxu0 0
    %725 = vmatprep.subr.bf16.mxu0 0
    %726 = vmatpush1.bf16.msra.mxu0 0
    %727 = vmatprep.subr.bf16.mxu0 0
    %728 = vmatpush1.bf16.msra.mxu0 0
    %729 = vmatprep.subr.bf16.mxu0 0
    %730 = vmatpush1.bf16.msra.mxu0 0
    %731 = vmatprep.subr.bf16.mxu0 0
    %732 = vmatpush1.bf16.msra.mxu0 0
    %733 = vmatprep.subr.bf16.mxu0 0
    %734 = vmatpush1.bf16.msra.mxu0 0
    %735 = vmatprep.subr.bf16.mxu0 0
    %736 = vmatpush1.bf16.msra.mxu0 0
    %737 = vmatprep.subr.bf16.mxu0 0
    %738 = vmatpush1.bf16.msra.mxu0 0
    %739 = vmatprep.subr.bf16.mxu0 0
    %740 = vmatpush1.bf16.msra.mxu0 0
    %741 = vmatprep.subr.bf16.mxu0 0
    %742 = vmatpush1.bf16.msra.mxu0 0
    %743 = vmatprep.subr.bf16.mxu0 0
    %744 = vmatpush1.bf16.msra.mxu0 0
    %745 = vmatprep.mubr.bf16.mxu0 0
    %746 = vmatmul.mubr.bf16.gmra.mrb[0].mxu0 %v666
    %v747 = vpop.f32.mrb[0].mxu0
    %v748 = vadd.f32 %v650, %v747
    %v749 = vpop.f32.mrb[0].mxu0
    %v750 = vpop.f32.mrb[0].mxu0
    %v751 = vadd.f32 %v650, %v750
    %v752 = vpop.f32.mrb[0].mxu0
    %753 = vmatprep.mubr.bf16.mxu0 0
    %754 = vmatmul.mubr.bf16.gmra.mrb[0].mxu0 %v669
    %v755 = vpop.f32.mrb[0].mxu0
    %v756 = vadd.f32 %v650, %v755
    %v757 = vpop.f32.mrb[0].mxu0
    %v758 = vpop.f32.mrb[0].mxu0
    %v759 = vadd.f32 %v650, %v758
    %v760 = vpop.f32.mrb[0].mxu0
    %761 = vmatprep.mubr.bf16.mxu0 0
    %762 = vmatmul.mubr.bf16.gmra.mrb[0].mxu0 %v672
    %v763 = vpop.f32.mrb[0].mxu0
    %v764 = vadd.f32 %v650, %v763
    %v765 = vpop.f32.mrb[0].mxu0
    %v766 = vpop.f32.mrb[0].mxu0
    %v767 = vadd.f32 %v650, %v766
    %v768 = vpop.f32.mrb[0].mxu0
    %769 = vmatprep.mubr.bf16.mxu0 0
    %770 = vmatmul.mubr.bf16.gmra.mrb[0].mxu0 %v675
    %v771 = vpop.f32.mrb[0].mxu0
    %v772 = vadd.f32 %v650, %v771
    %v773 = vpop.f32.mrb[0].mxu0
    %v774 = vpop.f32.mrb[0].mxu0
    %v775 = vadd.f32 %v650, %v774
    %v776 = vpop.f32.mrb[0].mxu0
    %777 = vmatprep.mubr.bf16.mxu0 0
    %778 = vmatmul.mubr.bf16.gmra.mrb[0].mxu0 %v678
    %v779 = vpop.f32.mrb[0].mxu0
    %v780 = vadd.f32 %v650, %v779
    %v781 = vpop.f32.mrb[0].mxu0
    %v782 = vpop.f32.mrb[0].mxu0
    %v783 = vadd.f32 %v650, %v782
    %v784 = vpop.f32.mrb[0].mxu0
    %785 = vmatprep.mubr.bf16.mxu0 0
    %786 = vmatmul.mubr.bf16.gmra.mrb[0].mxu0 %v681
    %v787 = vpop.f32.mrb[0].mxu0
    %v788 = vadd.f32 %v650, %v787
    %v789 = vpop.f32.mrb[0].mxu0
    %v790 = vpop.f32.mrb[0].mxu0
    %v791 = vadd.f32 %v650, %v790
    %v792 = vpop.f32.mrb[0].mxu0
    %793 = vmatprep.mubr.bf16.mxu0 0
    %794 = vmatmul.mubr.bf16.gmra.mrb[0].mxu0 %v684
    %v795 = vpop.f32.mrb[0].mxu0
    %v796 = vadd.f32 %v650, %v795
    %v797 = vpop.f32.mrb[0].mxu0
    %v798 = vpop.f32.mrb[0].mxu0
    %v799 = vadd.f32 %v650, %v798
    %v800 = vpop.f32.mrb[0].mxu0
    %801 = vmatprep.mubr.bf16.mxu0 0
    %802 = vmatmul.mubr.bf16.gmra.mrb[0].mxu0 %v687
    %v803 = vpop.f32.mrb[0].mxu0
    %v804 = vadd.f32 %v650, %v803
    %v805 = vpop.f32.mrb[0].mxu0
    %v806 = vpop.f32.mrb[0].mxu0
    %v807 = vadd.f32 %v650, %v806
    %v808 = vpop.f32.mrb[0].mxu0
    %809 = vmatprep.mubr.bf16.mxu0 0
    %810 = vmatmul.mubr.bf16.gmra.mrb[0].mxu0 %v690
    %v811 = vpop.f32.mrb[0].mxu0
    %v812 = vadd.f32 %v650, %v811
    %v813 = vpop.f32.mrb[0].mxu0
    %v814 = vpop.f32.mrb[0].mxu0
    %v815 = vadd.f32 %v650, %v814
    %v816 = vpop.f32.mrb[0].mxu0
    %817 = vmatprep.mubr.bf16.mxu0 0
    %818 = vmatmul.mubr.bf16.gmra.mrb[0].mxu0 %v693
    %v819 = vpop.f32.mrb[0].mxu0
    %v820 = vadd.f32 %v650, %v819
    %v821 = vpop.f32.mrb[0].mxu0
    %v822 = vpop.f32.mrb[0].mxu0
    %v823 = vadd.f32 %v650, %v822
    %v824 = vpop.f32.mrb[0].mxu0
    %825 = vmatprep.mubr.bf16.mxu0 0
    %826 = vmatmul.mubr.bf16.gmra.mrb[0].mxu0 %v696
    %v827 = vpop.f32.mrb[0].mxu0
    %v828 = vadd.f32 %v650, %v827
    %v829 = vpop.f32.mrb[0].mxu0
    %v830 = vpop.f32.mrb[0].mxu0
    %v831 = vadd.f32 %v650, %v830
    %v832 = vpop.f32.mrb[0].mxu0
    %833 = vmatprep.mubr.bf16.mxu0 0
    %834 = vmatmul.mubr.bf16.gmra.mrb[0].mxu0 %v699
    %v835 = vpop.f32.mrb[0].mxu0
    %v836 = vadd.f32 %v650, %v835
    %v837 = vpop.f32.mrb[0].mxu0
    %v838 = vpop.f32.mrb[0].mxu0
    %v839 = vadd.f32 %v650, %v838
    %v840 = vpop.f32.mrb[0].mxu0
    %841 = vmatprep.mubr.bf16.mxu0 0
    %842 = vmatmul.mubr.bf16.gmra.mrb[0].mxu0 %v702
    %v843 = vpop.f32.mrb[0].mxu0
    %v844 = vadd.f32 %v650, %v843
    %v845 = vpop.f32.mrb[0].mxu0
    %v846 = vpop.f32.mrb[0].mxu0
    %v847 = vadd.f32 %v650, %v846
    %v848 = vpop.f32.mrb[0].mxu0
    %849 = vmatprep.mubr.bf16.mxu0 0
    %850 = vmatmul.mubr.bf16.gmra.mrb[0].mxu0 %v705
    %v851 = vpop.f32.mrb[0].mxu0
    %v852 = vadd.f32 %v650, %v851
    %v853 = vpop.f32.mrb[0].mxu0
    %v854 = vpop.f32.mrb[0].mxu0
    %v855 = vadd.f32 %v650, %v854
    %v856 = vpop.f32.mrb[0].mxu0
    %857 = vmatprep.mubr.bf16.mxu0 0
    %858 = vmatmul.mubr.bf16.gmra.mrb[0].mxu0 %v708
    %v859 = vpop.f32.mrb[0].mxu0
    %v860 = vadd.f32 %v650, %v859
    %v861 = vpop.f32.mrb[0].mxu0
    %v862 = vpop.f32.mrb[0].mxu0
    %v863 = vadd.f32 %v650, %v862
    %v864 = vpop.f32.mrb[0].mxu0
    %865 = vmatprep.mubr.bf16.mxu0 0
    %866 = vmatmul.mubr.bf16.gmra.mrb[0].mxu0 %v711
    %v867 = vpop.f32.mrb[0].mxu0
    %v868 = vadd.f32 %v650, %v867
    %v869 = vpop.f32.mrb[0].mxu0
    %v870 = vpop.f32.mrb[0].mxu0
    %v871 = vadd.f32 %v650, %v870
    %v872 = vpop.f32.mrb[0].mxu0
    %873 = vdwg.mxu0
    %v874 = vmax.f32 %v748, 0.0
    %v875 = vmax.f32 %v751, 0.0
    %v876 = vmax.f32 %v756, 0.0
    %v877 = vmax.f32 %v759, 0.0
    %v878 = vmax.f32 %v764, 0.0
    %v879 = vmax.f32 %v767, 0.0
    %v880 = vmax.f32 %v772, 0.0
    %v881 = vmax.f32 %v775, 0.0
    %v882 = vmax.f32 %v780, 0.0
    %v883 = vmax.f32 %v783, 0.0
    %v884 = vmax.f32 %v788, 0.0
    %v885 = vmax.f32 %v791, 0.0
    %v886 = vmax.f32 %v796, 0.0
    %v887 = vmax.f32 %v799, 0.0
    %v888 = vmax.f32 %v804, 0.0
    %v889 = vmax.f32 %v807, 0.0
    %v890 = vmax.f32 %v812, 0.0
    %v891 = vmax.f32 %v815, 0.0
    %v892 = vmax.f32 %v820, 0.0
    %v893 = vmax.f32 %v823, 0.0
    %v894 = vmax.f32 %v828, 0.0
    %v895 = vmax.f32 %v831, 0.0
    %v896 = vmax.f32 %v836, 0.0
    %v897 = vmax.f32 %v839, 0.0
    %v898 = vmax.f32 %v844, 0.0
    %v899 = vmax.f32 %v847, 0.0
    %v900 = vmax.f32 %v852, 0.0
    %v901 = vmax.f32 %v855, 0.0
    %v902 = vmax.f32 %v860, 0.0
    %v903 = vmax.f32 %v863, 0.0
    %v904 = vmax.f32 %v868, 0.0
    %v905 = vmax.f32 %v871, 0.0
    %v906 = vpack.c.bf16 %v875, %v874
    %v907 = vpack.c.bf16 %v877, %v876
    %v908 = vpack.c.bf16 %v879, %v878
    %v909 = vpack.c.bf16 %v881, %v880
    %v910 = vpack.c.bf16 %v883, %v882
    %v911 = vpack.c.bf16 %v885, %v884
    %v912 = vpack.c.bf16 %v887, %v886
    %v913 = vpack.c.bf16 %v889, %v888
    %v914 = vpack.c.bf16 %v891, %v890
    %v915 = vpack.c.bf16 %v893, %v892
    %v916 = vpack.c.bf16 %v895, %v894
    %v917 = vpack.c.bf16 %v897, %v896
    %v918 = vpack.c.bf16 %v899, %v898
    %v919 = vpack.c.bf16 %v901, %v900
    %v920 = vpack.c.bf16 %v903, %v902
    %v921 = vpack.c.bf16 %v905, %v904
    %v922 = vld [vmem:[%s7] sm:$0xf]
    %v923 = vld [vmem:[%s7 + $0x4] sm:$0xf]
    %v924 = vld [vmem:[%s7 + $0x8] sm:$0xf]
    %v925 = vld [vmem:[%s7 + $0xc] sm:$0xf]
    %v926 = vld [vmem:[%s8] sm:$0x1]
    %v928 = vlaneseq
    %v929 = vshrl.u32 %v928, 7
    %v930 = vsub.s32 0, %v929
    %v931 = vrot.slane %v926, %v930
    %v937 = vunpack.c.l.b16 %v922
    %v938 = vunpack.c.l.b16 %v923
    %v939 = vunpack.c.l.b16 %v924
    %v940 = vunpack.c.l.b16 %v925
    %v941 = vpack.c.b16 %v938, %v937
    %v942 = vpack.c.b16 %v940, %v939
    %v946 = vsel %vm664, %v906, 0
    %v949 = vsel %vm664, %v907, 0
    %v952 = vsel %vm664, %v908, 0
    %v955 = vsel %vm664, %v909, 0
    %v958 = vsel %vm664, %v910, 0
    %v961 = vsel %vm664, %v911, 0
    %v964 = vsel %vm664, %v912, 0
    %v967 = vsel %vm664, %v913, 0
    %v970 = vsel %vm664, %v914, 0
    %v973 = vsel %vm664, %v915, 0
    %v976 = vsel %vm664, %v916, 0
    %v979 = vsel %vm664, %v917, 0
    %v982 = vsel %vm664, %v918, 0
    %v985 = vsel %vm664, %v919, 0
    %v988 = vsel %vm664, %v920, 0
    %v991 = vsel %vm664, %v921, 0
    %993 = vmatprep.subr.bf16.mxu0 0
    %994 = vmatpush1.bf16.msra.mxu0 %v941
    %995 = vmatprep.subr.bf16.mxu0 0
    %996 = vmatpush1.bf16.msra.mxu0 %v942
    %997 = vmatprep.subr.bf16.mxu0 0
    %998 = vmatpush1.bf16.msra.mxu0 0
    %999 = vmatprep.subr.bf16.mxu0 0
    %1000 = vmatpush1.bf16.msra.mxu0 0
    %1001 = vmatprep.subr.bf16.mxu0 0
    %1002 = vmatpush1.bf16.msra.mxu0 0
    %1003 = vmatprep.subr.bf16.mxu0 0
    %1004 = vmatpush1.bf16.msra.mxu0 0
    %1005 = vmatprep.subr.bf16.mxu0 0
    %1006 = vmatpush1.bf16.msra.mxu0 0
    %1007 = vmatprep.subr.bf16.mxu0 0
    %1008 = vmatpush1.bf16.msra.mxu0 0
    %1009 = vmatprep.subr.bf16.mxu0 0
    %1010 = vmatpush1.bf16.msra.mxu0 0
    %1011 = vmatprep.subr.bf16.mxu0 0
    %1012 = vmatpush1.bf16.msra.mxu0 0
    %1013 = vmatprep.subr.bf16.mxu0 0
    %1014 = vmatpush1.bf16.msra.mxu0 0
    %1015 = vmatprep.subr.bf16.mxu0 0
    %1016 = vmatpush1.bf16.msra.mxu0 0
    %1017 = vmatprep.subr.bf16.mxu0 0
    %1018 = vmatpush1.bf16.msra.mxu0 0
    %1019 = vmatprep.subr.bf16.mxu0 0
    %1020 = vmatpush1.bf16.msra.mxu0 0
    %1021 = vmatprep.subr.bf16.mxu0 0
    %1022 = vmatpush1.bf16.msra.mxu0 0
    %1023 = vmatprep.subr.bf16.mxu0 0
    %1024 = vmatpush1.bf16.msra.mxu0 0
    %1025 = vmatprep.mubr.bf16.mxu0 0
    %1026 = vmatmul.mubr.bf16.gmra.mrb[0].mxu0 %v946
    %v1027 = vpop.f32.mrb[0].mxu0
    %v1028 = vadd.f32 %v931, %v1027
    %v1029 = vpop.f32.mrb[0].mxu0
    %v1030 = vpop.f32.mrb[0].mxu0
    %v1031 = vadd.f32 %v931, %v1030
    %v1032 = vpop.f32.mrb[0].mxu0
    %1033 = vmatprep.mubr.bf16.mxu0 0
    %1034 = vmatmul.mubr.bf16.gmra.mrb[0].mxu0 %v949
    %v1035 = vpop.f32.mrb[0].mxu0
    %v1036 = vadd.f32 %v931, %v1035
    %v1037 = vpop.f32.mrb[0].mxu0
    %v1038 = vpop.f32.mrb[0].mxu0
    %v1039 = vadd.f32 %v931, %v1038
    %v1040 = vpop.f32.mrb[0].mxu0
    %1041 = vmatprep.mubr.bf16.mxu0 0
    %1042 = vmatmul.mubr.bf16.gmra.mrb[0].mxu0 %v952
    %v1043 = vpop.f32.mrb[0].mxu0
    %v1044 = vadd.f32 %v931, %v1043
    %v1045 = vpop.f32.mrb[0].mxu0
    %v1046 = vpop.f32.mrb[0].mxu0
    %v1047 = vadd.f32 %v931, %v1046
    %v1048 = vpop.f32.mrb[0].mxu0
    %1049 = vmatprep.mubr.bf16.mxu0 0
    %1050 = vmatmul.mubr.bf16.gmra.mrb[0].mxu0 %v955
    %v1051 = vpop.f32.mrb[0].mxu0
    %v1052 = vadd.f32 %v931, %v1051
    %v1053 = vpop.f32.mrb[0].mxu0
    %v1054 = vpop.f32.mrb[0].mxu0
    %v1055 = vadd.f32 %v931, %v1054
    %v1056 = vpop.f32.mrb[0].mxu0
    %1057 = vmatprep.mubr.bf16.mxu0 0
    %1058 = vmatmul.mubr.bf16.gmra.mrb[0].mxu0 %v958
    %v1059 = vpop.f32.mrb[0].mxu0
    %v1060 = vadd.f32 %v931, %v1059
    %v1061 = vpop.f32.mrb[0].mxu0
    %v1062 = vpop.f32.mrb[0].mxu0
    %v1063 = vadd.f32 %v931, %v1062
    %v1064 = vpop.f32.mrb[0].mxu0
    %1065 = vmatprep.mubr.bf16.mxu0 0
    %1066 = vmatmul.mubr.bf16.gmra.mrb[0].mxu0 %v961
    %v1067 = vpop.f32.mrb[0].mxu0
    %v1068 = vadd.f32 %v931, %v1067
    %v1069 = vpop.f32.mrb[0].mxu0
    %v1070 = vpop.f32.mrb[0].mxu0
    %v1071 = vadd.f32 %v931, %v1070
    %v1072 = vpop.f32.mrb[0].mxu0
    %1073 = vmatprep.mubr.bf16.mxu0 0
    %1074 = vmatmul.mubr.bf16.gmra.mrb[0].mxu0 %v964
    %v1075 = vpop.f32.mrb[0].mxu0
    %v1076 = vadd.f32 %v931, %v1075
    %v1077 = vpop.f32.mrb[0].mxu0
    %v1078 = vpop.f32.mrb[0].mxu0
    %v1079 = vadd.f32 %v931, %v1078
    %v1080 = vpop.f32.mrb[0].mxu0
    %1081 = vmatprep.mubr.bf16.mxu0 0
    %1082 = vmatmul.mubr.bf16.gmra.mrb[0].mxu0 %v967
    %v1083 = vpop.f32.mrb[0].mxu0
    %v1084 = vadd.f32 %v931, %v1083
    %v1085 = vpop.f32.mrb[0].mxu0
    %v1086 = vpop.f32.mrb[0].mxu0
    %v1087 = vadd.f32 %v931, %v1086
    %v1088 = vpop.f32.mrb[0].mxu0
    %1089 = vmatprep.mubr.bf16.mxu0 0
    %1090 = vmatmul.mubr.bf16.gmra.mrb[0].mxu0 %v970
    %v1091 = vpop.f32.mrb[0].mxu0
    %v1092 = vadd.f32 %v931, %v1091
    %v1093 = vpop.f32.mrb[0].mxu0
    %v1094 = vpop.f32.mrb[0].mxu0
    %v1095 = vadd.f32 %v931, %v1094
    %v1096 = vpop.f32.mrb[0].mxu0
    %1097 = vmatprep.mubr.bf16.mxu0 0
    %1098 = vmatmul.mubr.bf16.gmra.mrb[0].mxu0 %v973
    %v1099 = vpop.f32.mrb[0].mxu0
    %v1100 = vadd.f32 %v931, %v1099
    %v1101 = vpop.f32.mrb[0].mxu0
    %v1102 = vpop.f32.mrb[0].mxu0
    %v1103 = vadd.f32 %v931, %v1102
    %v1104 = vpop.f32.mrb[0].mxu0
    %1105 = vmatprep.mubr.bf16.mxu0 0
    %1106 = vmatmul.mubr.bf16.gmra.mrb[0].mxu0 %v976
    %v1107 = vpop.f32.mrb[0].mxu0
    %v1108 = vadd.f32 %v931, %v1107
    %v1109 = vpop.f32.mrb[0].mxu0
    %v1110 = vpop.f32.mrb[0].mxu0
    %v1111 = vadd.f32 %v931, %v1110
    %v1112 = vpop.f32.mrb[0].mxu0
    %1113 = vmatprep.mubr.bf16.mxu0 0
    %1114 = vmatmul.mubr.bf16.gmra.mrb[0].mxu0 %v979
    %v1115 = vpop.f32.mrb[0].mxu0
    %v1116 = vadd.f32 %v931, %v1115
    %v1117 = vpop.f32.mrb[0].mxu0
    %v1118 = vpop.f32.mrb[0].mxu0
    %v1119 = vadd.f32 %v931, %v1118
    %v1120 = vpop.f32.mrb[0].mxu0
    %1121 = vmatprep.mubr.bf16.mxu0 0
    %1122 = vmatmul.mubr.bf16.gmra.mrb[0].mxu0 %v982
    %v1123 = vpop.f32.mrb[0].mxu0
    %v1124 = vadd.f32 %v931, %v1123
    %v1125 = vpop.f32.mrb[0].mxu0
    %v1126 = vpop.f32.mrb[0].mxu0
    %v1127 = vadd.f32 %v931, %v1126
    %v1128 = vpop.f32.mrb[0].mxu0
    %1129 = vmatprep.mubr.bf16.mxu0 0
    %1130 = vmatmul.mubr.bf16.gmra.mrb[0].mxu0 %v985
    %v1131 = vpop.f32.mrb[0].mxu0
    %v1132 = vadd.f32 %v931, %v1131
    %v1133 = vpop.f32.mrb[0].mxu0
    %v1134 = vpop.f32.mrb[0].mxu0
    %v1135 = vadd.f32 %v931, %v1134
    %v1136 = vpop.f32.mrb[0].mxu0
    %1137 = vmatprep.mubr.bf16.mxu0 0
    %1138 = vmatmul.mubr.bf16.gmra.mrb[0].mxu0 %v988
    %v1139 = vpop.f32.mrb[0].mxu0
    %v1140 = vadd.f32 %v931, %v1139
    %v1141 = vpop.f32.mrb[0].mxu0
    %v1142 = vpop.f32.mrb[0].mxu0
    %v1143 = vadd.f32 %v931, %v1142
    %v1144 = vpop.f32.mrb[0].mxu0
    %1145 = vmatprep.mubr.bf16.mxu0 0
    %1146 = vmatmul.mubr.bf16.gmra.mrb[0].mxu0 %v991
    %v1147 = vpop.f32.mrb[0].mxu0
    %v1148 = vadd.f32 %v931, %v1147
    %v1149 = vpop.f32.mrb[0].mxu0
    %v1150 = vpop.f32.mrb[0].mxu0
    %v1151 = vadd.f32 %v931, %v1150
    %v1152 = vpop.f32.mrb[0].mxu0
    %1153 = vdwg.mxu0
    %v1154 = vmax.f32 %v1028, 0.0
    %v1155 = vmax.f32 %v1031, 0.0
    %v1156 = vmax.f32 %v1036, 0.0
    %v1157 = vmax.f32 %v1039, 0.0
    %v1158 = vmax.f32 %v1044, 0.0
    %v1159 = vmax.f32 %v1047, 0.0
    %v1160 = vmax.f32 %v1052, 0.0
    %v1161 = vmax.f32 %v1055, 0.0
    %v1162 = vmax.f32 %v1060, 0.0
    %v1163 = vmax.f32 %v1063, 0.0
    %v1164 = vmax.f32 %v1068, 0.0
    %v1165 = vmax.f32 %v1071, 0.0
    %v1166 = vmax.f32 %v1076, 0.0
    %v1167 = vmax.f32 %v1079, 0.0
    %v1168 = vmax.f32 %v1084, 0.0
    %v1169 = vmax.f32 %v1087, 0.0
    %v1170 = vmax.f32 %v1092, 0.0
    %v1171 = vmax.f32 %v1095, 0.0
    %v1172 = vmax.f32 %v1100, 0.0
    %v1173 = vmax.f32 %v1103, 0.0
    %v1174 = vmax.f32 %v1108, 0.0
    %v1175 = vmax.f32 %v1111, 0.0
    %v1176 = vmax.f32 %v1116, 0.0
    %v1177 = vmax.f32 %v1119, 0.0
    %v1178 = vmax.f32 %v1124, 0.0
    %v1179 = vmax.f32 %v1127, 0.0
    %v1180 = vmax.f32 %v1132, 0.0
    %v1181 = vmax.f32 %v1135, 0.0
    %v1182 = vmax.f32 %v1140, 0.0
    %v1183 = vmax.f32 %v1143, 0.0
    %v1184 = vmax.f32 %v1148, 0.0
    %v1185 = vmax.f32 %v1151, 0.0
    %v1186 = vpack.c.bf16 %v1155, %v1154
    %v1187 = vpack.c.bf16 %v1157, %v1156
    %v1188 = vpack.c.bf16 %v1159, %v1158
    %v1189 = vpack.c.bf16 %v1161, %v1160
    %v1190 = vpack.c.bf16 %v1163, %v1162
    %v1191 = vpack.c.bf16 %v1165, %v1164
    %v1192 = vpack.c.bf16 %v1167, %v1166
    %v1193 = vpack.c.bf16 %v1169, %v1168
    %v1194 = vpack.c.bf16 %v1171, %v1170
    %v1195 = vpack.c.bf16 %v1173, %v1172
    %v1196 = vpack.c.bf16 %v1175, %v1174
    %v1197 = vpack.c.bf16 %v1177, %v1176
    %v1198 = vpack.c.bf16 %v1179, %v1178
    %v1199 = vpack.c.bf16 %v1181, %v1180
    %v1200 = vpack.c.bf16 %v1183, %v1182
    %v1201 = vpack.c.bf16 %v1185, %v1184
    %v1202 = vld [vmem:[%s9] sm:$0xf]
    %v1203 = vld [vmem:[%s9 + $0x4] sm:$0xf]
    %v1204 = vld [vmem:[%s10] sm:$0x1]
    %v1206 = vlaneseq
    %v1207 = vshrl.u32 %v1206, 7
    %v1208 = vsub.s32 0, %v1207
    %v1209 = vrot.slane %v1204, %v1208
    %v1213 = vunpack.c.l.b16 %v1202
    %v1214 = vunpack.c.l.b16 %v1203
    %v1215 = vpack.c.b16 %v1214, %v1213
    %v1218 = vsel %vm103, %v1186, 0
    %v1221 = vsel %vm103, %v1187, 0
    %v1224 = vsel %vm103, %v1188, 0
    %v1227 = vsel %vm103, %v1189, 0
    %v1230 = vsel %vm103, %v1190, 0
    %v1233 = vsel %vm103, %v1191, 0
    %v1236 = vsel %vm103, %v1192, 0
    %v1239 = vsel %vm103, %v1193, 0
    %v1242 = vsel %vm103, %v1194, 0
    %v1245 = vsel %vm103, %v1195, 0
    %v1248 = vsel %vm103, %v1196, 0
    %v1251 = vsel %vm103, %v1197, 0
    %v1254 = vsel %vm103, %v1198, 0
    %v1257 = vsel %vm103, %v1199, 0
    %v1260 = vsel %vm103, %v1200, 0
    %v1263 = vsel %vm103, %v1201, 0
    %1265 = vmatprep.subr.bf16.mxu0 0
    %1266 = vmatpush1.bf16.msra.mxu0 %v1215
    %1267 = vmatprep.subr.bf16.mxu0 0
    %1268 = vmatpush1.bf16.msra.mxu0 0
    %1269 = vmatprep.subr.bf16.mxu0 0
    %1270 = vmatpush1.bf16.msra.mxu0 0
    %1271 = vmatprep.subr.bf16.mxu0 0
    %1272 = vmatpush1.bf16.msra.mxu0 0
    %1273 = vmatprep.subr.bf16.mxu0 0
    %1274 = vmatpush1.bf16.msra.mxu0 0
    %1275 = vmatprep.subr.bf16.mxu0 0
    %1276 = vmatpush1.bf16.msra.mxu0 0
    %1277 = vmatprep.subr.bf16.mxu0 0
    %1278 = vmatpush1.bf16.msra.mxu0 0
    %1279 = vmatprep.subr.bf16.mxu0 0
    %1280 = vmatpush1.bf16.msra.mxu0 0
    %1281 = vmatprep.subr.bf16.mxu0 0
    %1282 = vmatpush1.bf16.msra.mxu0 0
    %1283 = vmatprep.subr.bf16.mxu0 0
    %1284 = vmatpush1.bf16.msra.mxu0 0
    %1285 = vmatprep.subr.bf16.mxu0 0
    %1286 = vmatpush1.bf16.msra.mxu0 0
    %1287 = vmatprep.subr.bf16.mxu0 0
    %1288 = vmatpush1.bf16.msra.mxu0 0
    %1289 = vmatprep.subr.bf16.mxu0 0
    %1290 = vmatpush1.bf16.msra.mxu0 0
    %1291 = vmatprep.subr.bf16.mxu0 0
    %1292 = vmatpush1.bf16.msra.mxu0 0
    %1293 = vmatprep.subr.bf16.mxu0 0
    %1294 = vmatpush1.bf16.msra.mxu0 0
    %1295 = vmatprep.subr.bf16.mxu0 0
    %1296 = vmatpush1.bf16.msra.mxu0 0
    %1297 = vmatprep.mubr.bf16.mxu0 0
    %1298 = vmatmul.mubr.bf16.gmra.mrb[0].mxu0 %v1218
    %v1299 = vpop.f32.mrb[0].mxu0
    %v1300 = vadd.f32 %v1209, %v1299
    %v1301 = vpop.f32.mrb[0].mxu0
    %v1302 = vpop.f32.mrb[0].mxu0
    %v1303 = vadd.f32 %v1209, %v1302
    %v1304 = vpop.f32.mrb[0].mxu0
    %1305 = vmatprep.mubr.bf16.mxu0 0
    %1306 = vmatmul.mubr.bf16.gmra.mrb[0].mxu0 %v1221
    %v1307 = vpop.f32.mrb[0].mxu0
    %v1308 = vadd.f32 %v1209, %v1307
    %v1309 = vpop.f32.mrb[0].mxu0
    %v1310 = vpop.f32.mrb[0].mxu0
    %v1311 = vadd.f32 %v1209, %v1310
    %v1312 = vpop.f32.mrb[0].mxu0
    %1313 = vmatprep.mubr.bf16.mxu0 0
    %1314 = vmatmul.mubr.bf16.gmra.mrb[0].mxu0 %v1224
    %v1315 = vpop.f32.mrb[0].mxu0
    %v1316 = vadd.f32 %v1209, %v1315
    %v1317 = vpop.f32.mrb[0].mxu0
    %v1318 = vpop.f32.mrb[0].mxu0
    %v1319 = vadd.f32 %v1209, %v1318
    %v1320 = vpop.f32.mrb[0].mxu0
    %1321 = vmatprep.mubr.bf16.mxu0 0
    %1322 = vmatmul.mubr.bf16.gmra.mrb[0].mxu0 %v1227
    %v1323 = vpop.f32.mrb[0].mxu0
    %v1324 = vadd.f32 %v1209, %v1323
    %v1325 = vpop.f32.mrb[0].mxu0
    %v1326 = vpop.f32.mrb[0].mxu0
    %v1327 = vadd.f32 %v1209, %v1326
    %v1328 = vpop.f32.mrb[0].mxu0
    %1329 = vmatprep.mubr.bf16.mxu0 0
    %1330 = vmatmul.mubr.bf16.gmra.mrb[0].mxu0 %v1230
    %v1331 = vpop.f32.mrb[0].mxu0
    %v1332 = vadd.f32 %v1209, %v1331
    %v1333 = vpop.f32.mrb[0].mxu0
    %v1334 = vpop.f32.mrb[0].mxu0
    %v1335 = vadd.f32 %v1209, %v1334
    %v1336 = vpop.f32.mrb[0].mxu0
    %1337 = vmatprep.mubr.bf16.mxu0 0
    %1338 = vmatmul.mubr.bf16.gmra.mrb[0].mxu0 %v1233
    %v1339 = vpop.f32.mrb[0].mxu0
    %v1340 = vadd.f32 %v1209, %v1339
    %v1341 = vpop.f32.mrb[0].mxu0
    %v1342 = vpop.f32.mrb[0].mxu0
    %v1343 = vadd.f32 %v1209, %v1342
    %v1344 = vpop.f32.mrb[0].mxu0
    %1345 = vmatprep.mubr.bf16.mxu0 0
    %1346 = vmatmul.mubr.bf16.gmra.mrb[0].mxu0 %v1236
    %v1347 = vpop.f32.mrb[0].mxu0
    %v1348 = vadd.f32 %v1209, %v1347
    %v1349 = vpop.f32.mrb[0].mxu0
    %v1350 = vpop.f32.mrb[0].mxu0
    %v1351 = vadd.f32 %v1209, %v1350
    %v1352 = vpop.f32.mrb[0].mxu0
    %1353 = vmatprep.mubr.bf16.mxu0 0
    %1354 = vmatmul.mubr.bf16.gmra.mrb[0].mxu0 %v1239
    %v1355 = vpop.f32.mrb[0].mxu0
    %v1356 = vadd.f32 %v1209, %v1355
    %v1357 = vpop.f32.mrb[0].mxu0
    %v1358 = vpop.f32.mrb[0].mxu0
    %v1359 = vadd.f32 %v1209, %v1358
    %v1360 = vpop.f32.mrb[0].mxu0
    %1361 = vmatprep.mubr.bf16.mxu0 0
    %1362 = vmatmul.mubr.bf16.gmra.mrb[0].mxu0 %v1242
    %v1363 = vpop.f32.mrb[0].mxu0
    %v1364 = vadd.f32 %v1209, %v1363
    %v1365 = vpop.f32.mrb[0].mxu0
    %v1366 = vpop.f32.mrb[0].mxu0
    %v1367 = vadd.f32 %v1209, %v1366
    %v1368 = vpop.f32.mrb[0].mxu0
    %1369 = vmatprep.mubr.bf16.mxu0 0
    %1370 = vmatmul.mubr.bf16.gmra.mrb[0].mxu0 %v1245
    %v1371 = vpop.f32.mrb[0].mxu0
    %v1372 = vadd.f32 %v1209, %v1371
    %v1373 = vpop.f32.mrb[0].mxu0
    %v1374 = vpop.f32.mrb[0].mxu0
    %v1375 = vadd.f32 %v1209, %v1374
    %v1376 = vpop.f32.mrb[0].mxu0
    %1377 = vmatprep.mubr.bf16.mxu0 0
    %1378 = vmatmul.mubr.bf16.gmra.mrb[0].mxu0 %v1248
    %v1379 = vpop.f32.mrb[0].mxu0
    %v1380 = vadd.f32 %v1209, %v1379
    %v1381 = vpop.f32.mrb[0].mxu0
    %v1382 = vpop.f32.mrb[0].mxu0
    %v1383 = vadd.f32 %v1209, %v1382
    %v1384 = vpop.f32.mrb[0].mxu0
    %1385 = vmatprep.mubr.bf16.mxu0 0
    %1386 = vmatmul.mubr.bf16.gmra.mrb[0].mxu0 %v1251
    %v1387 = vpop.f32.mrb[0].mxu0
    %v1388 = vadd.f32 %v1209, %v1387
    %v1389 = vpop.f32.mrb[0].mxu0
    %v1390 = vpop.f32.mrb[0].mxu0
    %v1391 = vadd.f32 %v1209, %v1390
    %v1392 = vpop.f32.mrb[0].mxu0
    %1393 = vmatprep.mubr.bf16.mxu0 0
    %1394 = vmatmul.mubr.bf16.gmra.mrb[0].mxu0 %v1254
    %v1395 = vpop.f32.mrb[0].mxu0
    %v1396 = vadd.f32 %v1209, %v1395
    %v1397 = vpop.f32.mrb[0].mxu0
    %v1398 = vpop.f32.mrb[0].mxu0
    %v1399 = vadd.f32 %v1209, %v1398
    %v1400 = vpop.f32.mrb[0].mxu0
    %1401 = vmatprep.mubr.bf16.mxu0 0
    %1402 = vmatmul.mubr.bf16.gmra.mrb[0].mxu0 %v1257
    %v1403 = vpop.f32.mrb[0].mxu0
    %v1404 = vadd.f32 %v1209, %v1403
    %v1405 = vpop.f32.mrb[0].mxu0
    %v1406 = vpop.f32.mrb[0].mxu0
    %v1407 = vadd.f32 %v1209, %v1406
    %v1408 = vpop.f32.mrb[0].mxu0
    %1409 = vmatprep.mubr.bf16.mxu0 0
    %1410 = vmatmul.mubr.bf16.gmra.mrb[0].mxu0 %v1260
    %v1411 = vpop.f32.mrb[0].mxu0
    %v1412 = vadd.f32 %v1209, %v1411
    %v1413 = vpop.f32.mrb[0].mxu0
    %v1414 = vpop.f32.mrb[0].mxu0
    %v1415 = vadd.f32 %v1209, %v1414
    %v1416 = vpop.f32.mrb[0].mxu0
    %1417 = vmatprep.mubr.bf16.mxu0 0
    %1418 = vmatmul.mubr.bf16.gmra.mrb[0].mxu0 %v1263
    %v1419 = vpop.f32.mrb[0].mxu0
    %v1420 = vadd.f32 %v1209, %v1419
    %v1421 = vpop.f32.mrb[0].mxu0
    %v1422 = vpop.f32.mrb[0].mxu0
    %v1423 = vadd.f32 %v1209, %v1422
    %v1424 = vpop.f32.mrb[0].mxu0
    %1425 = vdwg.mxu0
    %v1426 = vxor.u32 %v1300, 2147483648
    %v1427 = vxor.u32 %v1303, 2147483648
    %v1428 = vxor.u32 %v1308, 2147483648
    %v1429 = vxor.u32 %v1311, 2147483648
    %v1430 = vxor.u32 %v1316, 2147483648
    %v1431 = vxor.u32 %v1319, 2147483648
    %v1432 = vxor.u32 %v1324, 2147483648
    %v1433 = vxor.u32 %v1327, 2147483648
    %v1434 = vxor.u32 %v1332, 2147483648
    %v1435 = vxor.u32 %v1335, 2147483648
    %v1436 = vxor.u32 %v1340, 2147483648
    %v1437 = vxor.u32 %v1343, 2147483648
    %v1438 = vxor.u32 %v1348, 2147483648
    %v1439 = vxor.u32 %v1351, 2147483648
    %v1440 = vxor.u32 %v1356, 2147483648
    %v1441 = vxor.u32 %v1359, 2147483648
    %v1442 = vxor.u32 %v1364, 2147483648
    %v1443 = vxor.u32 %v1367, 2147483648
    %v1444 = vxor.u32 %v1372, 2147483648
    %v1445 = vxor.u32 %v1375, 2147483648
    %v1446 = vxor.u32 %v1380, 2147483648
    %v1447 = vxor.u32 %v1383, 2147483648
    %v1448 = vxor.u32 %v1388, 2147483648
    %v1449 = vxor.u32 %v1391, 2147483648
    %v1450 = vxor.u32 %v1396, 2147483648
    %v1451 = vxor.u32 %v1399, 2147483648
    %v1452 = vxor.u32 %v1404, 2147483648
    %v1453 = vxor.u32 %v1407, 2147483648
    %v1454 = vxor.u32 %v1412, 2147483648
    %v1455 = vxor.u32 %v1415, 2147483648
    %v1456 = vxor.u32 %v1420, 2147483648
    %v1457 = vxor.u32 %v1423, 2147483648
    %v1458 = vmul.f32 %v1426, 1.442695
    %v1459 = vpow.pop %v1458
    %v1460 = vmul.f32 %v1427, 1.442695
    %v1461 = vpow.pop %v1460
    %v1462 = vmul.f32 %v1428, 1.442695
    %v1463 = vpow.pop %v1462
    %v1464 = vmul.f32 %v1429, 1.442695
    %v1465 = vpow.pop %v1464
    %v1466 = vmul.f32 %v1430, 1.442695
    %v1467 = vpow.pop %v1466
    %v1468 = vmul.f32 %v1431, 1.442695
    %v1469 = vpow.pop %v1468
    %v1470 = vmul.f32 %v1432, 1.442695
    %v1471 = vpow.pop %v1470
    %v1472 = vmul.f32 %v1433, 1.442695
    %v1473 = vpow.pop %v1472
    %v1474 = vmul.f32 %v1434, 1.442695
    %v1475 = vpow.pop %v1474
    %v1476 = vmul.f32 %v1435, 1.442695
    %v1477 = vpow.pop %v1476
    %v1478 = vmul.f32 %v1436, 1.442695
    %v1479 = vpow.pop %v1478
    %v1480 = vmul.f32 %v1437, 1.442695
    %v1481 = vpow.pop %v1480
    %v1482 = vmul.f32 %v1438, 1.442695
    %v1483 = vpow.pop %v1482
    %v1484 = vmul.f32 %v1439, 1.442695
    %v1485 = vpow.pop %v1484
    %v1486 = vmul.f32 %v1440, 1.442695
    %v1487 = vpow.pop %v1486
    %v1488 = vmul.f32 %v1441, 1.442695
    %v1489 = vpow.pop %v1488
    %v1490 = vmul.f32 %v1442, 1.442695
    %v1491 = vpow.pop %v1490
    %v1492 = vmul.f32 %v1443, 1.442695
    %v1493 = vpow.pop %v1492
    %v1494 = vmul.f32 %v1444, 1.442695
    %v1495 = vpow.pop %v1494
    %v1496 = vmul.f32 %v1445, 1.442695
    %v1497 = vpow.pop %v1496
    %v1498 = vmul.f32 %v1446, 1.442695
    %v1499 = vpow.pop %v1498
    %v1500 = vmul.f32 %v1447, 1.442695
    %v1501 = vpow.pop %v1500
    %v1502 = vmul.f32 %v1448, 1.442695
    %v1503 = vpow.pop %v1502
    %v1504 = vmul.f32 %v1449, 1.442695
    %v1505 = vpow.pop %v1504
    %v1506 = vmul.f32 %v1450, 1.442695
    %v1507 = vpow.pop %v1506
    %v1508 = vmul.f32 %v1451, 1.442695
    %v1509 = vpow.pop %v1508
    %v1510 = vmul.f32 %v1452, 1.442695
    %v1511 = vpow.pop %v1510
    %v1512 = vmul.f32 %v1453, 1.442695
    %v1513 = vpow.pop %v1512
    %v1514 = vmul.f32 %v1454, 1.442695
    %v1515 = vpow.pop %v1514
    %v1516 = vmul.f32 %v1455, 1.442695
    %v1517 = vpow.pop %v1516
    %v1518 = vmul.f32 %v1456, 1.442695
    %v1519 = vpow.pop %v1518
    %v1520 = vmul.f32 %v1457, 1.442695
    %v1521 = vpow.pop %v1520
    %v1522 = vadd.f32 %v1459, 1.0
    %v1523 = vadd.f32 %v1461, 1.0
    %v1524 = vadd.f32 %v1463, 1.0
    %v1525 = vadd.f32 %v1465, 1.0
    %v1526 = vadd.f32 %v1467, 1.0
    %v1527 = vadd.f32 %v1469, 1.0
    %v1528 = vadd.f32 %v1471, 1.0
    %v1529 = vadd.f32 %v1473, 1.0
    %v1530 = vadd.f32 %v1475, 1.0
    %v1531 = vadd.f32 %v1477, 1.0
    %v1532 = vadd.f32 %v1479, 1.0
    %v1533 = vadd.f32 %v1481, 1.0
    %v1534 = vadd.f32 %v1483, 1.0
    %v1535 = vadd.f32 %v1485, 1.0
    %v1536 = vadd.f32 %v1487, 1.0
    %v1537 = vadd.f32 %v1489, 1.0
    %v1538 = vadd.f32 %v1491, 1.0
    %v1539 = vadd.f32 %v1493, 1.0
    %v1540 = vadd.f32 %v1495, 1.0
    %v1541 = vadd.f32 %v1497, 1.0
    %v1542 = vadd.f32 %v1499, 1.0
    %v1543 = vadd.f32 %v1501, 1.0
    %v1544 = vadd.f32 %v1503, 1.0
    %v1545 = vadd.f32 %v1505, 1.0
    %v1546 = vadd.f32 %v1507, 1.0
    %v1547 = vadd.f32 %v1509, 1.0
    %v1548 = vadd.f32 %v1511, 1.0
    %v1549 = vadd.f32 %v1513, 1.0
    %v1550 = vadd.f32 %v1515, 1.0
    %v1551 = vadd.f32 %v1517, 1.0
    %v1552 = vadd.f32 %v1519, 1.0
    %v1553 = vadd.f32 %v1521, 1.0
    %v1554 = vrcp.pop %v1522
    %v1555 = vmul.f32 1.0, %v1554
    %v1556 = vrcp.pop %v1523
    %v1557 = vmul.f32 1.0, %v1556
    %v1558 = vrcp.pop %v1524
    %v1559 = vmul.f32 1.0, %v1558
    %v1560 = vrcp.pop %v1525
    %v1561 = vmul.f32 1.0, %v1560
    %v1562 = vrcp.pop %v1526
    %v1563 = vmul.f32 1.0, %v1562
    %v1564 = vrcp.pop %v1527
    %v1565 = vmul.f32 1.0, %v1564
    %v1566 = vrcp.pop %v1528
    %v1567 = vmul.f32 1.0, %v1566
    %v1568 = vrcp.pop %v1529
    %v1569 = vmul.f32 1.0, %v1568
    %v1570 = vrcp.pop %v1530
    %v1571 = vmul.f32 1.0, %v1570
    %v1572 = vrcp.pop %v1531
    %v1573 = vmul.f32 1.0, %v1572
    %v1574 = vrcp.pop %v1532
    %v1575 = vmul.f32 1.0, %v1574
    %v1576 = vrcp.pop %v1533
    %v1577 = vmul.f32 1.0, %v1576
    %v1578 = vrcp.pop %v1534
    %v1579 = vmul.f32 1.0, %v1578
    %v1580 = vrcp.pop %v1535
    %v1581 = vmul.f32 1.0, %v1580
    %v1582 = vrcp.pop %v1536
    %v1583 = vmul.f32 1.0, %v1582
    %v1584 = vrcp.pop %v1537
    %v1585 = vmul.f32 1.0, %v1584
    %v1586 = vrcp.pop %v1538
    %v1587 = vmul.f32 1.0, %v1586
    %v1588 = vrcp.pop %v1539
    %v1589 = vmul.f32 1.0, %v1588
    %v1590 = vrcp.pop %v1540
    %v1591 = vmul.f32 1.0, %v1590
    %v1592 = vrcp.pop %v1541
    %v1593 = vmul.f32 1.0, %v1592
    %v1594 = vrcp.pop %v1542
    %v1595 = vmul.f32 1.0, %v1594
    %v1596 = vrcp.pop %v1543
    %v1597 = vmul.f32 1.0, %v1596
    %v1598 = vrcp.pop %v1544
    %v1599 = vmul.f32 1.0, %v1598
    %v1600 = vrcp.pop %v1545
    %v1601 = vmul.f32 1.0, %v1600
    %v1602 = vrcp.pop %v1546
    %v1603 = vmul.f32 1.0, %v1602
    %v1604 = vrcp.pop %v1547
    %v1605 = vmul.f32 1.0, %v1604
    %v1606 = vrcp.pop %v1548
    %v1607 = vmul.f32 1.0, %v1606
    %v1608 = vrcp.pop %v1549
    %v1609 = vmul.f32 1.0, %v1608
    %v1610 = vrcp.pop %v1550
    %v1611 = vmul.f32 1.0, %v1610
    %v1612 = vrcp.pop %v1551
    %v1613 = vmul.f32 1.0, %v1612
    %v1614 = vrcp.pop %v1552
    %v1615 = vmul.f32 1.0, %v1614
    %v1616 = vrcp.pop %v1553
    %v1617 = vmul.f32 1.0, %v1616
    %v1618 = vpack.c.bf16 %v1557, %v1555
    %v1619 = vpack.c.bf16 %v1561, %v1559
    %v1620 = vpack.c.bf16 %v1565, %v1563
    %v1621 = vpack.c.bf16 %v1569, %v1567
    %v1622 = vpack.c.bf16 %v1573, %v1571
    %v1623 = vpack.c.bf16 %v1577, %v1575
    %v1624 = vpack.c.bf16 %v1581, %v1579
    %v1625 = vpack.c.bf16 %v1585, %v1583
    %v1626 = vpack.c.bf16 %v1589, %v1587
    %v1627 = vpack.c.bf16 %v1593, %v1591
    %v1628 = vpack.c.bf16 %v1597, %v1595
    %v1629 = vpack.c.bf16 %v1601, %v1599
    %v1630 = vpack.c.bf16 %v1605, %v1603
    %v1631 = vpack.c.bf16 %v1609, %v1607
    %v1632 = vpack.c.bf16 %v1613, %v1611
    %v1633 = vpack.c.bf16 %v1617, %v1615
    %v1650 = vunpack.c.l.b16 %v1618
    %v1651 = vunpack.c.h.b16 %v1618
    %v1652 = vunpack.c.l.b16 %v1619
    %v1653 = vunpack.c.h.b16 %v1619
    %v1654 = vunpack.c.l.b16 %v1620
    %v1655 = vunpack.c.h.b16 %v1620
    %v1656 = vunpack.c.l.b16 %v1621
    %v1657 = vunpack.c.h.b16 %v1621
    %v1658 = vunpack.c.l.b16 %v1622
    %v1659 = vunpack.c.h.b16 %v1622
    %v1660 = vunpack.c.l.b16 %v1623
    %v1661 = vunpack.c.h.b16 %v1623
    %v1662 = vunpack.c.l.b16 %v1624
    %v1663 = vunpack.c.h.b16 %v1624
    %v1664 = vunpack.c.l.b16 %v1625
    %v1665 = vunpack.c.h.b16 %v1625
    %v1666 = vunpack.c.l.b16 %v1626
    %v1667 = vunpack.c.h.b16 %v1626
    %v1668 = vunpack.c.l.b16 %v1627
    %v1669 = vunpack.c.h.b16 %v1627
    %v1670 = vunpack.c.l.b16 %v1628
    %v1671 = vunpack.c.h.b16 %v1628
    %v1672 = vunpack.c.l.b16 %v1629
    %v1673 = vunpack.c.h.b16 %v1629
    %v1674 = vunpack.c.l.b16 %v1630
    %v1675 = vunpack.c.h.b16 %v1630
    %v1676 = vunpack.c.l.b16 %v1631
    %v1677 = vunpack.c.h.b16 %v1631
    %v1678 = vunpack.c.l.b16 %v1632
    %v1679 = vunpack.c.h.b16 %v1632
    %v1680 = vunpack.c.l.b16 %v1633
    %v1681 = vunpack.c.h.b16 %v1633
    %v1682 = vpack.c.b16 %v1650, %v1650
    %v1683 = vpack.c.b16 %v1651, %v1651
    %v1684 = vpack.c.b16 %v1652, %v1652
    %v1685 = vpack.c.b16 %v1653, %v1653
    %v1686 = vpack.c.b16 %v1654, %v1654
    %v1687 = vpack.c.b16 %v1655, %v1655
    %v1688 = vpack.c.b16 %v1656, %v1656
    %v1689 = vpack.c.b16 %v1657, %v1657
    %v1690 = vpack.c.b16 %v1658, %v1658
    %v1691 = vpack.c.b16 %v1659, %v1659
    %v1692 = vpack.c.b16 %v1660, %v1660
    %v1693 = vpack.c.b16 %v1661, %v1661
    %v1694 = vpack.c.b16 %v1662, %v1662
    %v1695 = vpack.c.b16 %v1663, %v1663
    %v1696 = vpack.c.b16 %v1664, %v1664
    %v1697 = vpack.c.b16 %v1665, %v1665
    %v1698 = vpack.c.b16 %v1666, %v1666
    %v1699 = vpack.c.b16 %v1667, %v1667
    %v1700 = vpack.c.b16 %v1668, %v1668
    %v1701 = vpack.c.b16 %v1669, %v1669
    %v1702 = vpack.c.b16 %v1670, %v1670
    %v1703 = vpack.c.b16 %v1671, %v1671
    %v1704 = vpack.c.b16 %v1672, %v1672
    %v1705 = vpack.c.b16 %v1673, %v1673
    %v1706 = vpack.c.b16 %v1674, %v1674
    %v1707 = vpack.c.b16 %v1675, %v1675
    %v1708 = vpack.c.b16 %v1676, %v1676
    %v1709 = vpack.c.b16 %v1677, %v1677
    %v1710 = vpack.c.b16 %v1678, %v1678
    %v1711 = vpack.c.b16 %v1679, %v1679
    %v1712 = vpack.c.b16 %v1680, %v1680
    %v1713 = vpack.c.b16 %v1681, %v1681
    %1746 = vst [vmem:[#allocation2] sm:$0xf] %v1682
    %1747 = vst [vmem:[#allocation2 + $0x4] sm:$0xf] %v1683
    %1748 = vst [vmem:[#allocation2 + $0x8] sm:$0xf] %v1684
    %1749 = vst [vmem:[#allocation2 + $0xc] sm:$0xf] %v1685
    %1750 = vst [vmem:[#allocation2 + $0x10] sm:$0xf] %v1686
    %1751 = vst [vmem:[#allocation2 + $0x14] sm:$0xf] %v1687
    %1752 = vst [vmem:[#allocation2 + $0x18] sm:$0xf] %v1688
    %1753 = vst [vmem:[#allocation2 + $0x1c] sm:$0xf] %v1689
    %1754 = vst [vmem:[#allocation2 + $0x20] sm:$0xf] %v1690
    %1755 = vst [vmem:[#allocation2 + $0x24] sm:$0xf] %v1691
    %1756 = vst [vmem:[#allocation2 + $0x28] sm:$0xf] %v1692
    %1757 = vst [vmem:[#allocation2 + $0x2c] sm:$0xf] %v1693
    %1758 = vst [vmem:[#allocation2 + $0x30] sm:$0xf] %v1694
    %1759 = vst [vmem:[#allocation2 + $0x34] sm:$0xf] %v1695
    %1760 = vst [vmem:[#allocation2 + $0x38] sm:$0xf] %v1696
    %1761 = vst [vmem:[#allocation2 + $0x3c] sm:$0xf] %v1697
    %1762 = vst [vmem:[#allocation2 + $0x40] sm:$0xf] %v1698
    %1763 = vst [vmem:[#allocation2 + $0x44] sm:$0xf] %v1699
    %1764 = vst [vmem:[#allocation2 + $0x48] sm:$0xf] %v1700
    %1765 = vst [vmem:[#allocation2 + $0x4c] sm:$0xf] %v1701
    %1766 = vst [vmem:[#allocation2 + $0x50] sm:$0xf] %v1702
    %1767 = vst [vmem:[#allocation2 + $0x54] sm:$0xf] %v1703
    %1768 = vst [vmem:[#allocation2 + $0x58] sm:$0xf] %v1704
    %1769 = vst [vmem:[#allocation2 + $0x5c] sm:$0xf] %v1705
    %1770 = vst [vmem:[#allocation2 + $0x60] sm:$0xf] %v1706
    %1771 = vst [vmem:[#allocation2 + $0x64] sm:$0xf] %v1707
    %1772 = vst [vmem:[#allocation2 + $0x68] sm:$0xf] %v1708
    %1773 = vst [vmem:[#allocation2 + $0x6c] sm:$0xf] %v1709
    %1774 = vst [vmem:[#allocation2 + $0x70] sm:$0xf] %v1710
    %1775 = vst [vmem:[#allocation2 + $0x74] sm:$0xf] %v1711
    %1776 = vst [vmem:[#allocation2 + $0x78] sm:$0xf] %v1712
    %1777 = vst [vmem:[#allocation2 + $0x7c] sm:$0xf] %v1713
    // Predicated region
    $region46: #{tpu_custom_call.1} parent=1 // pred_check
      _
    $region47: #{tpu_custom_call.1} parent=1 // pred_check_branch
      %1779 = sbr.rel (0) target = $region49
    $region48: #{tpu_custom_call.1} parent=1 // pred_region
      %s1781 = ssub.s32 2048, 2048
      %1782 = vsyncadd [#allocation3], %s1781
      %s1783 = sshll.u32 [#allocation2], 4
      %s1784 = int_to_ptr.vmem [resolvable:$true] %s1783
      %1789 = dma.vmem_to_hbm [thread:$0]  %s1784, 2048, %s11, [#allocation3], 64, 64, 4
    $region49: #{tpu_custom_call.1} parent=1 // pred_fallthru
      _
    // Predicated region
    $region50: #{tpu_custom_call.1} parent=1 // pred_check
      _
    $region51: #{tpu_custom_call.1} parent=1 // pred_check_branch
      %1791 = sbr.rel (0) target = $region53
    $region52: #{tpu_custom_call.1} parent=1 // pred_region
      %1792 = dma.done [#allocation3], 2048
    $region53: #{tpu_custom_call.1} parent=1 // pred_fallthru
      _
    %1793 = vsyncpa [#allocation3], 1

</llo_original>
